<compile_context>
chip_gen: v7x
topology: tpu7x:2x2x1
jax: 0.10.0
libtpu: 0.0.40
codegen_flags: <defaults>
</compile_context>

<pallas_src>
import functools

import jax
import jax.numpy as jnp
from jax import lax
from jax.experimental import pallas as pl
from jax.experimental.pallas import tpu as pltpu


def _round_up(x, m):
    return (x + m - 1) // m * m


def attention_kernel(x_ref, ctx_ref, bias_ref, wq_ref, wkv_ref, wo_ref, o_ref,
                     *, bb, heads, dh, scale):
    # x_ref:   (bb, N, D)      ctx_ref: (bb, M, D)     bias_ref: (bb, 1, M) f32
    # wq_ref:  (D, H*dh)       wkv_ref: (D, 2*H*dh)    wo_ref:   (H*dh, D)
    # o_ref:   (bb, N, D) f32
    n = x_ref.shape[1]
    m = ctx_ref.shape[1]
    d = x_ref.shape[2]
    inner = heads * dh
    cdt = wq_ref.dtype  # matmul-input dtype (f32 or bf16); softmax stays f32

    # Fold batch into rows so the projection matmuls fill MXU rows.
    xr = x_ref[...].reshape(bb * n, d)      # (bb*N, D)
    cr = ctx_ref[...].reshape(bb * m, d)    # (bb*M, D)

    # Q projection (+ scale folded in) and ONE fused KV projection.
    q = jnp.dot(xr, wq_ref[...], preferred_element_type=jnp.float32) * scale
    kv = jnp.dot(cr, wkv_ref[...], preferred_element_type=jnp.float32)

    q = q.astype(cdt).reshape(bb, n, inner)        # (bb, N, H*dh)
    kv = kv.astype(cdt).reshape(bb, m, 2 * inner)  # (bb, M, 2*H*dh)
    wo = wo_ref[...]                               # (H*dh, D)

    for b in range(bb):                 # static unroll over batch block
        bias = bias_ref[b]              # (1, M) additive mask bias, f32
        acc = jnp.zeros((n, d), jnp.float32)
        for h in range(heads):          # static unroll over heads (dh is 128-aligned)
            sl = slice(h * dh, (h + 1) * dh)
            qh = q[b, :, sl]                                     # (N, dh)
            kh = kv[b, :, sl]                                    # (M, dh)
            vh = kv[b, :, inner + h * dh: inner + (h + 1) * dh]  # (M, dh)

            # scores: contraction over dh (>=128 after padding)
            s = lax.dot_general(qh, kh, (((1,), (1,)), ((), ())),
                                preferred_element_type=jnp.float32)  # (N, M)
            s = s + bias
            s = s - jnp.max(s, axis=-1, keepdims=True)
            p = jnp.exp(s)
            p = p * pl.reciprocal(jnp.sum(p, axis=-1, keepdims=True), approx=True)

            oh = jnp.dot(p.astype(cdt), vh,
                         preferred_element_type=jnp.float32)         # (N, dh)
            # Accumulate straight into the output projection (no concat).
            acc = acc + jnp.dot(oh.astype(cdt), wo[sl, :],
                                preferred_element_type=jnp.float32)  # (N, D)
        o_ref[b] = acc.astype(o_ref.dtype)


def attention_forward(x, context, params, mask=None, *, heads, dim_head,
                      and_self_attend=False, compute_dtype=jnp.float32):
    """Pallas-backed equivalent of Attention.forward."""
    wq, wkv, wo = params["wq"], params["wkv"], params["wo"]
    inner = heads * dim_head
    scale = float(dim_head) ** -0.5

    # Glue (matches the PyTorch module's pre-processing).
    if and_self_attend:
        context = jnp.concatenate([x, context], axis=-2)
        if mask is not None:
            pad = jnp.ones((x.shape[0], x.shape[1]), dtype=bool)
            mask = jnp.concatenate([pad, mask], axis=-1)

    B, N, D = x.shape
    M = context.shape[1]

    # --- alignment padding so every kernel slice/store is lane/sublane dense ---
    D_pad = _round_up(D, 128)
    M_pad = _round_up(M, 128)
    N_pad = _round_up(N, 8)
    dh_pad = _round_up(dim_head, 128)
    inner_pad = heads * dh_pad

    x_p = jnp.pad(x, ((0, 0), (0, N_pad - N), (0, D_pad - D)))
    ctx_p = jnp.pad(context, ((0, 0), (0, M_pad - M), (0, D_pad - D)))

    # Additive mask bias (0 = keep, -1e30 = drop); padded context cols dropped.
    if mask is None:
        keep = jnp.ones((B, M), dtype=bool)
    else:
        keep = mask.astype(bool)
    keep = jnp.pad(keep, ((0, 0), (0, M_pad - M)), constant_values=False)
    bias = jnp.where(keep, 0.0, -1e30).astype(jnp.float32).reshape(B, 1, M_pad)

    # Pad weights per head along dh and along D; keep kv fused as one matrix.
    wk = wkv[:, :inner]
    wv = wkv[:, inner:]

    def pad_head_cols(w):  # (D, H*dim_head) -> (D_pad, H*dh_pad), zero padded
        w = w.reshape(D, heads, dim_head)
        w = jnp.pad(w, ((0, D_pad - D), (0, 0), (0, dh_pad - dim_head)))
        return w.reshape(D_pad, heads * dh_pad)

    wq_p = pad_head_cols(wq)
    wkv_p = jnp.concatenate([pad_head_cols(wk), pad_head_cols(wv)], axis=-1)
    wo_p = jnp.pad(wo.reshape(heads, dim_head, D),
                   ((0, 0), (0, dh_pad - dim_head), (0, D_pad - D))
                   ).reshape(inner_pad, D_pad)

    cdt = jnp.dtype(compute_dtype)
    x_p = x_p.astype(cdt)
    ctx_p = ctx_p.astype(cdt)
    wq_p = wq_p.astype(cdt)
    wkv_p = wkv_p.astype(cdt)
    wo_p = wo_p.astype(cdt)

    # Fold several batch elements into one grid step (fills MXU rows,
    # amortizes per-grid-step overhead).
    bb = 1
    for cand in range(min(B, 8), 0, -1):
        if B % cand == 0:
            bb = cand
            break

    kernel = functools.partial(attention_kernel, bb=bb, heads=heads,
                               dh=dh_pad, scale=scale)

    # NOTE: weight BlockSpecs have constant index_maps; at these sizes the
    # default double-buffering is negligible VMEM, so no Buffered(1) override.
    out = pl.pallas_call(
        kernel,
        out_shape=jax.ShapeDtypeStruct((B, N_pad, D_pad), jnp.float32),
        grid=(B // bb,),
        in_specs=[
            pl.BlockSpec((bb, N_pad, D_pad), lambda i: (i, 0, 0)),      # x
            pl.BlockSpec((bb, M_pad, D_pad), lambda i: (i, 0, 0)),      # context
            pl.BlockSpec((bb, 1, M_pad), lambda i: (i, 0, 0)),          # mask bias
            pl.BlockSpec((D_pad, inner_pad), lambda i: (0, 0)),         # Wq
            pl.BlockSpec((D_pad, 2 * inner_pad), lambda i: (0, 0)),     # Wkv (fused)
            pl.BlockSpec((inner_pad, D_pad), lambda i: (0, 0)),         # Wout
        ],
        out_specs=pl.BlockSpec((bb, N_pad, D_pad), lambda i: (i, 0, 0)),
        compiler_params=pltpu.CompilerParams(
            dimension_semantics=("parallel",)),
    )(x_p, ctx_p, bias, wq_p, wkv_p, wo_p)

    return out[:, :N, :D]


def reference_forward(x, context, params, mask=None, *, heads, dim_head,
                      and_self_attend=False):
    """Pure-JAX reference mirroring the PyTorch forward exactly."""
    wq, wkv, wo = params["wq"], params["wkv"], params["wo"]
    inner_dim = heads * dim_head
    scale = float(dim_head) ** -0.5
    if and_self_attend:
        context = jnp.concatenate([x, context], axis=-2)
        if mask is not None:
            pad = jnp.ones((x.shape[0], x.shape[1]), dtype=bool)
            mask = jnp.concatenate([pad, mask], axis=-1)
    q = x @ wq                      # (B, N, H*dh)
    kv = context @ wkv              # (B, M, 2*H*dh)
    k, v = kv[..., :inner_dim], kv[..., inner_dim:]

    def split_heads(t):
        b, n, _ = t.shape
        return t.reshape(b, n, heads, dim_head).transpose(0, 2, 1, 3)

    q, k, v = map(split_heads, (q, k, v))
    dots = jnp.einsum("bhid,bhjd->bhij", q, k) * scale
    if mask is not None:
        neg_max = -jnp.finfo(dots.dtype).max
        dots = jnp.where(mask[:, None, None, :], dots, neg_max)
    attn = jax.nn.softmax(dots, axis=-1)
    out = jnp.einsum("bhij,bhjd->bhid", attn, v)
    out = out.transpose(0, 2, 1, 3).reshape(x.shape[0], x.shape[1], inner_dim)
    return out @ wo


def init_params(key, dim, heads, dim_head):
    """Deterministic init matching nn.Linear default U(-1/sqrt(in), 1/sqrt(in))."""
    inner_dim = heads * dim_head
    k1, k2, k3 = jax.random.split(key, 3)
    bound = 1.0 / (dim ** 0.5)
    wq = jax.random.uniform(k1, (dim, inner_dim), jnp.float32, -bound, bound)
    wkv = jax.random.uniform(k2, (dim, 2 * inner_dim), jnp.float32, -bound, bound)
    bound_o = 1.0 / (inner_dim ** 0.5)
    wo = jax.random.uniform(k3, (inner_dim, dim), jnp.float32, -bound_o, bound_o)
    return {"wq": wq, "wkv": wkv, "wo": wo}


def default_compute_dtype():
    """bf16 matmul inputs on v6e / v7x, f32 elsewhere (per perf review)."""
    kind = jax.devices()[0].device_kind.lower()
    if any(tag in kind for tag in ("v6", "v7", "7x")):
        return jnp.bfloat16
    return jnp.float32


if __name__ == "__main__":
    # Small shapes consistent with the module's forward signature.
    B, N, M = 2, 8, 16          # batch, query len, context len
    dim, heads, dim_head = 32, 2, 64

    key = jax.random.PRNGKey(0)
    kx, kc, km, kp = jax.random.split(key, 4)
    x = jax.random.normal(kx, (B, N, dim), jnp.float32)
    context = jax.random.normal(kc, (B, M, dim), jnp.float32)
    mask = jax.random.uniform(km, (B, M)) > 0.3   # bool, True = attend

    params = init_params(kp, dim, heads, dim_head)

    ref = reference_forward(x, context, params, mask=mask,
                            heads=heads, dim_head=dim_head,
                            and_self_attend=False)

    # f32 matmul-input path (works on every TPU generation).
    out = attention_forward(x, context, params, mask=mask,
                            heads=heads, dim_head=dim_head,
                            and_self_attend=False,
                            compute_dtype=jnp.float32)
    out = jax.block_until_ready(out)
    assert out.shape == (B, N, dim), out.shape
    assert jnp.allclose(out, ref, rtol=1e-2, atol=1e-2), \
        float(jnp.max(jnp.abs(out - ref)))

    # bf16 matmul-input path on v6e / v7x (softmax math stays f32).
    if default_compute_dtype() == jnp.bfloat16:
        out_bf16 = attention_forward(x, context, params, mask=mask,
                                     heads=heads, dim_head=dim_head,
                                     and_self_attend=False,
                                     compute_dtype=jnp.bfloat16)
        out_bf16 = jax.block_until_ready(out_bf16)
        assert jnp.allclose(out_bf16, ref, rtol=1e-1, atol=1e-1), \
            float(jnp.max(jnp.abs(out_bf16 - ref)))

    print("KERNEL_OK")
</pallas_src>

<mosaic_0001>
module attributes {stable_mosaic.version = 11 : i64} {
  func.func @attention_kernel(%arg0: i32, %arg1: memref<2x8x128xf32, #tpu.memory_space<vmem>>, %arg2: memref<2x128x128xf32, #tpu.memory_space<vmem>>, %arg3: memref<2x1x128xf32, #tpu.memory_space<vmem>>, %arg4: memref<128x256xf32, #tpu.memory_space<vmem>>, %arg5: memref<128x512xf32, #tpu.memory_space<vmem>>, %arg6: memref<256x128xf32, #tpu.memory_space<vmem>>, %arg7: memref<2x8x128xf32, #tpu.memory_space<vmem>>) attributes {dimension_semantics = [#tpu.dimension_semantics<parallel>], iteration_bounds = array<i64: 1>, scalar_prefetch = 0 : i64, scratch_operands = 0 : i64, tpu.core_type = #tpu.core_type<tc>, window_params = [{transform_indices = @transform_0, window_bounds = array<i64: 2, 8, 128>}, {transform_indices = @transform_1, window_bounds = array<i64: 2, 128, 128>}, {transform_indices = @transform_2, window_bounds = array<i64: 2, 1, 128>}, {pipeline_mode = #tpu.pipeline_mode<synchronous>, transform_indices = @transform_3, window_bounds = array<i64: 128, 256>}, {pipeline_mode = #tpu.pipeline_mode<synchronous>, transform_indices = @transform_4, window_bounds = array<i64: 128, 512>}, {pipeline_mode = #tpu.pipeline_mode<synchronous>, transform_indices = @transform_5, window_bounds = array<i64: 256, 128>}, {transform_indices = @transform_6, window_bounds = array<i64: 2, 8, 128>}]} {
    %c0 = arith.constant 0 : index
    %c0_0 = arith.constant 0 : index
    %c0_1 = arith.constant 0 : index
    %0 = vector.load %arg1[%c0, %c0_0, %c0_1] : memref<2x8x128xf32, #tpu.memory_space<vmem>>, vector<2x8x128xf32>
    %1 = vector.shape_cast %0 : vector<2x8x128xf32> to vector<16x128xf32>
    %c0_2 = arith.constant 0 : index
    %c0_3 = arith.constant 0 : index
    %c0_4 = arith.constant 0 : index
    %2 = vector.load %arg2[%c0_2, %c0_3, %c0_4] : memref<2x128x128xf32, #tpu.memory_space<vmem>>, vector<2x128x128xf32>
    %3 = vector.shape_cast %2 : vector<2x128x128xf32> to vector<256x128xf32>
    %c0_5 = arith.constant 0 : index
    %c0_6 = arith.constant 0 : index
    %4 = vector.load %arg4[%c0_5, %c0_6] : memref<128x256xf32, #tpu.memory_space<vmem>>, vector<128x256xf32>
    %cst = arith.constant dense<0.000000e+00> : vector<16x256xf32>
    %5 = tpu.matmul %1, %4, %cst {dimension_numbers = #tpu.dot_dimension_numbers<[1], [0], [0], [1], [0, 0, 1, 1], [], []>} : vector<16x128xf32>, vector<128x256xf32>, vector<16x256xf32> -> vector<16x256xf32>
    %cst_7 = arith.constant 1.250000e-01 : f32
    %6 = vector.broadcast %cst_7 : f32 to vector<16x256xf32>
    %7 = arith.mulf %5, %6 : vector<16x256xf32>
    %c0_8 = arith.constant 0 : index
    %c0_9 = arith.constant 0 : index
    %8 = vector.load %arg5[%c0_8, %c0_9] : memref<128x512xf32, #tpu.memory_space<vmem>>, vector<128x512xf32>
    %cst_10 = arith.constant dense<0.000000e+00> : vector<256x512xf32>
    %9 = tpu.matmul %3, %8, %cst_10 {dimension_numbers = #tpu.dot_dimension_numbers<[1], [0], [0], [1], [0, 0, 1, 1], [], []>} : vector<256x128xf32>, vector<128x512xf32>, vector<256x512xf32> -> vector<256x512xf32>
    %10 = vector.shape_cast %7 : vector<16x256xf32> to vector<2x8x256xf32>
    %11 = vector.shape_cast %9 : vector<256x512xf32> to vector<2x128x512xf32>
    %c0_11 = arith.constant 0 : index
    %c0_12 = arith.constant 0 : index
    %12 = vector.load %arg6[%c0_11, %c0_12] : memref<256x128xf32, #tpu.memory_space<vmem>>, vector<256x128xf32>
    %c0_13 = arith.constant 0 : index
    %c0_14 = arith.constant 0 : index
    %c0_15 = arith.constant 0 : index
    %13 = vector.load %arg3[%c0_13, %c0_14, %c0_15] : memref<2x1x128xf32, #tpu.memory_space<vmem>>, vector<1x1x128xf32>
    %14 = vector.shape_cast %13 : vector<1x1x128xf32> to vector<1x128xf32>
    %cst_16 = arith.constant 0.000000e+00 : f32
    %15 = vector.broadcast %cst_16 : f32 to vector<8x128xf32>
    %16 = vector.extract_strided_slice %10 {offsets = [0, 0, 0], sizes = [1, 8, 128], strides = [1, 1, 1]} : vector<2x8x256xf32> to vector<1x8x128xf32>
    %17 = vector.shape_cast %16 : vector<1x8x128xf32> to vector<8x128xf32>
    %18 = vector.extract_strided_slice %11 {offsets = [0, 0, 0], sizes = [1, 128, 128], strides = [1, 1, 1]} : vector<2x128x512xf32> to vector<1x128x128xf32>
    %19 = vector.shape_cast %18 : vector<1x128x128xf32> to vector<128x128xf32>
    %20 = vector.extract_strided_slice %11 {offsets = [0, 0, 256], sizes = [1, 128, 128], strides = [1, 1, 1]} : vector<2x128x512xf32> to vector<1x128x128xf32>
    %21 = vector.shape_cast %20 : vector<1x128x128xf32> to vector<128x128xf32>
    %cst_17 = arith.constant dense<0.000000e+00> : vector<8x128xf32>
    %22 = tpu.matmul %17, %19, %cst_17 {dimension_numbers = #tpu.dot_dimension_numbers<[1], [1], [0], [0], [0, 0, 1, 0], [], []>} : vector<8x128xf32>, vector<128x128xf32>, vector<8x128xf32> -> vector<8x128xf32>
    %23 = vector.broadcast %14 : vector<1x128xf32> to vector<8x128xf32>
    %24 = arith.addf %22, %23 : vector<8x128xf32>
    %cst_18 = arith.constant dense<0xFF800000> : vector<8xf32>
    %25 = vector.multi_reduction <maximumf>, %24, %cst_18 [1] : vector<8x128xf32> to vector<8xf32>
    %26 = vector.shape_cast %25 : vector<8xf32> to vector<8x1xf32>
    %27 = vector.broadcast %26 : vector<8x1xf32> to vector<8x128xf32>
    %28 = arith.subf %24, %27 : vector<8x128xf32>
    %29 = math.exp %28 : vector<8x128xf32>
    %cst_19 = arith.constant dense<0.000000e+00> : vector<8xf32>
    %30 = vector.multi_reduction <add>, %29, %cst_19 [1] : vector<8x128xf32> to vector<8xf32>
    %31 = vector.shape_cast %30 : vector<8xf32> to vector<8x1xf32>
    %32 = tpu.reciprocal %31 {approx = true} : vector<8x1xf32> -> vector<8x1xf32>
    %33 = vector.broadcast %32 : vector<8x1xf32> to vector<8x128xf32>
    %34 = arith.mulf %29, %33 : vector<8x128xf32>
    %cst_20 = arith.constant dense<0.000000e+00> : vector<8x128xf32>
    %35 = tpu.matmul %34, %21, %cst_20 {dimension_numbers = #tpu.dot_dimension_numbers<[1], [0], [0], [1], [0, 0, 1, 1], [], []>} : vector<8x128xf32>, vector<128x128xf32>, vector<8x128xf32> -> vector<8x128xf32>
    %36 = vector.extract_strided_slice %12 {offsets = [0, 0], sizes = [128, 128], strides = [1, 1]} : vector<256x128xf32> to vector<128x128xf32>
    %cst_21 = arith.constant dense<0.000000e+00> : vector<8x128xf32>
    %37 = tpu.matmul %35, %36, %cst_21 {dimension_numbers = #tpu.dot_dimension_numbers<[1], [0], [0], [1], [0, 0, 1, 1], [], []>} : vector<8x128xf32>, vector<128x128xf32>, vector<8x128xf32> -> vector<8x128xf32>
    %38 = arith.addf %15, %37 : vector<8x128xf32>
    %39 = vector.extract_strided_slice %10 {offsets = [0, 0, 128], sizes = [1, 8, 128], strides = [1, 1, 1]} : vector<2x8x256xf32> to vector<1x8x128xf32>
    %40 = vector.shape_cast %39 : vector<1x8x128xf32> to vector<8x128xf32>
    %41 = vector.extract_strided_slice %11 {offsets = [0, 0, 128], sizes = [1, 128, 128], strides = [1, 1, 1]} : vector<2x128x512xf32> to vector<1x128x128xf32>
    %42 = vector.shape_cast %41 : vector<1x128x128xf32> to vector<128x128xf32>
    %43 = vector.extract_strided_slice %11 {offsets = [0, 0, 384], sizes = [1, 128, 128], strides = [1, 1, 1]} : vector<2x128x512xf32> to vector<1x128x128xf32>
    %44 = vector.shape_cast %43 : vector<1x128x128xf32> to vector<128x128xf32>
    %cst_22 = arith.constant dense<0.000000e+00> : vector<8x128xf32>
    %45 = tpu.matmul %40, %42, %cst_22 {dimension_numbers = #tpu.dot_dimension_numbers<[1], [1], [0], [0], [0, 0, 1, 0], [], []>} : vector<8x128xf32>, vector<128x128xf32>, vector<8x128xf32> -> vector<8x128xf32>
    %46 = vector.broadcast %14 : vector<1x128xf32> to vector<8x128xf32>
    %47 = arith.addf %45, %46 : vector<8x128xf32>
    %cst_23 = arith.constant dense<0xFF800000> : vector<8xf32>
    %48 = vector.multi_reduction <maximumf>, %47, %cst_23 [1] : vector<8x128xf32> to vector<8xf32>
    %49 = vector.shape_cast %48 : vector<8xf32> to vector<8x1xf32>
    %50 = vector.broadcast %49 : vector<8x1xf32> to vector<8x128xf32>
    %51 = arith.subf %47, %50 : vector<8x128xf32>
    %52 = math.exp %51 : vector<8x128xf32>
    %cst_24 = arith.constant dense<0.000000e+00> : vector<8xf32>
    %53 = vector.multi_reduction <add>, %52, %cst_24 [1] : vector<8x128xf32> to vector<8xf32>
    %54 = vector.shape_cast %53 : vector<8xf32> to vector<8x1xf32>
    %55 = tpu.reciprocal %54 {approx = true} : vector<8x1xf32> -> vector<8x1xf32>
    %56 = vector.broadcast %55 : vector<8x1xf32> to vector<8x128xf32>
    %57 = arith.mulf %52, %56 : vector<8x128xf32>
    %cst_25 = arith.constant dense<0.000000e+00> : vector<8x128xf32>
    %58 = tpu.matmul %57, %44, %cst_25 {dimension_numbers = #tpu.dot_dimension_numbers<[1], [0], [0], [1], [0, 0, 1, 1], [], []>} : vector<8x128xf32>, vector<128x128xf32>, vector<8x128xf32> -> vector<8x128xf32>
    %59 = vector.extract_strided_slice %12 {offsets = [128, 0], sizes = [128, 128], strides = [1, 1]} : vector<256x128xf32> to vector<128x128xf32>
    %cst_26 = arith.constant dense<0.000000e+00> : vector<8x128xf32>
    %60 = tpu.matmul %58, %59, %cst_26 {dimension_numbers = #tpu.dot_dimension_numbers<[1], [0], [0], [1], [0, 0, 1, 1], [], []>} : vector<8x128xf32>, vector<128x128xf32>, vector<8x128xf32> -> vector<8x128xf32>
    %61 = arith.addf %38, %60 : vector<8x128xf32>
    %c0_27 = arith.constant 0 : index
    %c0_28 = arith.constant 0 : index
    %c0_29 = arith.constant 0 : index
    %62 = vector.load %arg7[%c0_27, %c0_28, %c0_29] : memref<2x8x128xf32, #tpu.memory_space<vmem>>, vector<1x8x128xf32>
    %63 = vector.shape_cast %62 : vector<1x8x128xf32> to vector<8x128xf32>
    %64 = vector.shape_cast %61 : vector<8x128xf32> to vector<1x8x128xf32>
    tpu.vector_store %arg7[%c0_27, %c0_28, %c0_29], %64 {strides = array<i32>} : memref<2x8x128xf32, #tpu.memory_space<vmem>>, vector<1x8x128xf32>,
    %c1 = arith.constant 1 : index
    %c0_30 = arith.constant 0 : index
    %c0_31 = arith.constant 0 : index
    %65 = vector.load %arg3[%c1, %c0_30, %c0_31] : memref<2x1x128xf32, #tpu.memory_space<vmem>>, vector<1x1x128xf32>
    %66 = vector.shape_cast %65 : vector<1x1x128xf32> to vector<1x128xf32>
    %cst_32 = arith.constant 0.000000e+00 : f32
    %67 = vector.broadcast %cst_32 : f32 to vector<8x128xf32>
    %68 = vector.extract_strided_slice %10 {offsets = [1, 0, 0], sizes = [1, 8, 128], strides = [1, 1, 1]} : vector<2x8x256xf32> to vector<1x8x128xf32>
    %69 = vector.shape_cast %68 : vector<1x8x128xf32> to vector<8x128xf32>
    %70 = vector.extract_strided_slice %11 {offsets = [1, 0, 0], sizes = [1, 128, 128], strides = [1, 1, 1]} : vector<2x128x512xf32> to vector<1x128x128xf32>
    %71 = vector.shape_cast %70 : vector<1x128x128xf32> to vector<128x128xf32>
    %72 = vector.extract_strided_slice %11 {offsets = [1, 0, 256], sizes = [1, 128, 128], strides = [1, 1, 1]} : vector<2x128x512xf32> to vector<1x128x128xf32>
    %73 = vector.shape_cast %72 : vector<1x128x128xf32> to vector<128x128xf32>
    %cst_33 = arith.constant dense<0.000000e+00> : vector<8x128xf32>
    %74 = tpu.matmul %69, %71, %cst_33 {dimension_numbers = #tpu.dot_dimension_numbers<[1], [1], [0], [0], [0, 0, 1, 0], [], []>} : vector<8x128xf32>, vector<128x128xf32>, vector<8x128xf32> -> vector<8x128xf32>
    %75 = vector.broadcast %66 : vector<1x128xf32> to vector<8x128xf32>
    %76 = arith.addf %74, %75 : vector<8x128xf32>
    %cst_34 = arith.constant dense<0xFF800000> : vector<8xf32>
    %77 = vector.multi_reduction <maximumf>, %76, %cst_34 [1] : vector<8x128xf32> to vector<8xf32>
    %78 = vector.shape_cast %77 : vector<8xf32> to vector<8x1xf32>
    %79 = vector.broadcast %78 : vector<8x1xf32> to vector<8x128xf32>
    %80 = arith.subf %76, %79 : vector<8x128xf32>
    %81 = math.exp %80 : vector<8x128xf32>
    %cst_35 = arith.constant dense<0.000000e+00> : vector<8xf32>
    %82 = vector.multi_reduction <add>, %81, %cst_35 [1] : vector<8x128xf32> to vector<8xf32>
    %83 = vector.shape_cast %82 : vector<8xf32> to vector<8x1xf32>
    %84 = tpu.reciprocal %83 {approx = true} : vector<8x1xf32> -> vector<8x1xf32>
    %85 = vector.broadcast %84 : vector<8x1xf32> to vector<8x128xf32>
    %86 = arith.mulf %81, %85 : vector<8x128xf32>
    %cst_36 = arith.constant dense<0.000000e+00> : vector<8x128xf32>
    %87 = tpu.matmul %86, %73, %cst_36 {dimension_numbers = #tpu.dot_dimension_numbers<[1], [0], [0], [1], [0, 0, 1, 1], [], []>} : vector<8x128xf32>, vector<128x128xf32>, vector<8x128xf32> -> vector<8x128xf32>
    %88 = vector.extract_strided_slice %12 {offsets = [0, 0], sizes = [128, 128], strides = [1, 1]} : vector<256x128xf32> to vector<128x128xf32>
    %cst_37 = arith.constant dense<0.000000e+00> : vector<8x128xf32>
    %89 = tpu.matmul %87, %88, %cst_37 {dimension_numbers = #tpu.dot_dimension_numbers<[1], [0], [0], [1], [0, 0, 1, 1], [], []>} : vector<8x128xf32>, vector<128x128xf32>, vector<8x128xf32> -> vector<8x128xf32>
    %90 = arith.addf %67, %89 : vector<8x128xf32>
    %91 = vector.extract_strided_slice %10 {offsets = [1, 0, 128], sizes = [1, 8, 128], strides = [1, 1, 1]} : vector<2x8x256xf32> to vector<1x8x128xf32>
    %92 = vector.shape_cast %91 : vector<1x8x128xf32> to vector<8x128xf32>
    %93 = vector.extract_strided_slice %11 {offsets = [1, 0, 128], sizes = [1, 128, 128], strides = [1, 1, 1]} : vector<2x128x512xf32> to vector<1x128x128xf32>
    %94 = vector.shape_cast %93 : vector<1x128x128xf32> to vector<128x128xf32>
    %95 = vector.extract_strided_slice %11 {offsets = [1, 0, 384], sizes = [1, 128, 128], strides = [1, 1, 1]} : vector<2x128x512xf32> to vector<1x128x128xf32>
    %96 = vector.shape_cast %95 : vector<1x128x128xf32> to vector<128x128xf32>
    %cst_38 = arith.constant dense<0.000000e+00> : vector<8x128xf32>
    %97 = tpu.matmul %92, %94, %cst_38 {dimension_numbers = #tpu.dot_dimension_numbers<[1], [1], [0], [0], [0, 0, 1, 0], [], []>} : vector<8x128xf32>, vector<128x128xf32>, vector<8x128xf32> -> vector<8x128xf32>
    %98 = vector.broadcast %66 : vector<1x128xf32> to vector<8x128xf32>
    %99 = arith.addf %97, %98 : vector<8x128xf32>
    %cst_39 = arith.constant dense<0xFF800000> : vector<8xf32>
    %100 = vector.multi_reduction <maximumf>, %99, %cst_39 [1] : vector<8x128xf32> to vector<8xf32>
    %101 = vector.shape_cast %100 : vector<8xf32> to vector<8x1xf32>
    %102 = vector.broadcast %101 : vector<8x1xf32> to vector<8x128xf32>
    %103 = arith.subf %99, %102 : vector<8x128xf32>
    %104 = math.exp %103 : vector<8x128xf32>
    %cst_40 = arith.constant dense<0.000000e+00> : vector<8xf32>
    %105 = vector.multi_reduction <add>, %104, %cst_40 [1] : vector<8x128xf32> to vector<8xf32>
    %106 = vector.shape_cast %105 : vector<8xf32> to vector<8x1xf32>
    %107 = tpu.reciprocal %106 {approx = true} : vector<8x1xf32> -> vector<8x1xf32>
    %108 = vector.broadcast %107 : vector<8x1xf32> to vector<8x128xf32>
    %109 = arith.mulf %104, %108 : vector<8x128xf32>
    %cst_41 = arith.constant dense<0.000000e+00> : vector<8x128xf32>
    %110 = tpu.matmul %109, %96, %cst_41 {dimension_numbers = #tpu.dot_dimension_numbers<[1], [0], [0], [1], [0, 0, 1, 1], [], []>} : vector<8x128xf32>, vector<128x128xf32>, vector<8x128xf32> -> vector<8x128xf32>
    %111 = vector.extract_strided_slice %12 {offsets = [128, 0], sizes = [128, 128], strides = [1, 1]} : vector<256x128xf32> to vector<128x128xf32>
    %cst_42 = arith.constant dense<0.000000e+00> : vector<8x128xf32>
    %112 = tpu.matmul %110, %111, %cst_42 {dimension_numbers = #tpu.dot_dimension_numbers<[1], [0], [0], [1], [0, 0, 1, 1], [], []>} : vector<8x128xf32>, vector<128x128xf32>, vector<8x128xf32> -> vector<8x128xf32>
    %113 = arith.addf %90, %112 : vector<8x128xf32>
    %c1_43 = arith.constant 1 : index
    %c0_44 = arith.constant 0 : index
    %c0_45 = arith.constant 0 : index
    %114 = vector.load %arg7[%c1_43, %c0_44, %c0_45] : memref<2x8x128xf32, #tpu.memory_space<vmem>>, vector<1x8x128xf32>
    %115 = vector.shape_cast %114 : vector<1x8x128xf32> to vector<8x128xf32>
    %116 = vector.shape_cast %113 : vector<8x128xf32> to vector<1x8x128xf32>
    tpu.vector_store %arg7[%c1_43, %c0_44, %c0_45], %116 {strides = array<i32>} : memref<2x8x128xf32, #tpu.memory_space<vmem>>, vector<1x8x128xf32>,
    return
  }
  func.func @transform_0(%arg0: i32) -> (i32, i32, i32) {
    %c0_i32 = arith.constant 0 : i32
    %c0_i32_0 = arith.constant 0 : i32
    %c0_i32_1 = arith.constant 0 : i32
    return %arg0, %c0_i32, %c0_i32_0 : i32, i32, i32
  }
  func.func @transform_1(%arg0: i32) -> (i32, i32, i32) {
    %c0_i32 = arith.constant 0 : i32
    %c0_i32_0 = arith.constant 0 : i32
    %c0_i32_1 = arith.constant 0 : i32
    return %arg0, %c0_i32, %c0_i32_0 : i32, i32, i32
  }
  func.func @transform_2(%arg0: i32) -> (i32, i32, i32) {
    %c0_i32 = arith.constant 0 : i32
    %c0_i32_0 = arith.constant 0 : i32
    %c0_i32_1 = arith.constant 0 : i32
    return %arg0, %c0_i32, %c0_i32_0 : i32, i32, i32
  }
  func.func @transform_3(%arg0: i32) -> (i32, i32) {
    %c0_i32 = arith.constant 0 : i32
    %c0_i32_0 = arith.constant 0 : i32
    %c0_i32_1 = arith.constant 0 : i32
    return %c0_i32, %c0_i32_0 : i32, i32
  }
  func.func @transform_4(%arg0: i32) -> (i32, i32) {
    %c0_i32 = arith.constant 0 : i32
    %c0_i32_0 = arith.constant 0 : i32
    %c0_i32_1 = arith.constant 0 : i32
    return %c0_i32, %c0_i32_0 : i32, i32
  }
  func.func @transform_5(%arg0: i32) -> (i32, i32) {
    %c0_i32 = arith.constant 0 : i32
    %c0_i32_0 = arith.constant 0 : i32
    %c0_i32_1 = arith.constant 0 : i32
    return %c0_i32, %c0_i32_0 : i32, i32
  }
  func.func @transform_6(%arg0: i32) -> (i32, i32, i32) {
    %c0_i32 = arith.constant 0 : i32
    %c0_i32_0 = arith.constant 0 : i32
    %c0_i32_1 = arith.constant 0 : i32
    return %arg0, %c0_i32, %c0_i32_0 : i32, i32, i32
  }
}

</mosaic_0001>

<llo_original>
// kernel: tpu_custom_call.1
$region0: #{tpu_custom_call.1}
  #allocation0 [shape = 'u32[]', space=smem, size = 0x4, offset = 0x4, fixed_abs, tag = 'smem constant byte address 0x4 - core index']
  #allocation1 [shape = 'u32[144,128]{1,0:T(1,128)}', space=vmem, size = 0x12000, scoped, tag = 'internal scratch']
  %s0 = inlined_call_operand.hbm [shape: f32[2,8,128], index: 0, kind: input, shape index: {}]
  %s1 = inlined_call_operand.hbm [shape: f32[2,128,128], index: 1, kind: input, shape index: {}]
  %s2 = inlined_call_operand.vmem [shape: f32[2,1,128], index: 2, kind: input, shape index: {}]
  %s3 = inlined_call_operand.hbm [shape: f32[128,256], index: 3, kind: input, shape index: {}]
  %s4 = inlined_call_operand.hbm [shape: f32[128,512], index: 4, kind: input, shape index: {}]
  %s5 = inlined_call_operand.hbm [shape: f32[256,128], index: 5, kind: input, shape index: {}]
  %s6 = inlined_call_operand.hbm [shape: f32[2,8,128], index: 6, kind: output, shape index: {}]
  %s7 = sld [smem:[#allocation0]]
  $region54: #{tpu_custom_call.1} parent=0
    _
  %s9 = ssub.s32 1, %s7
  %s10 = scalar_select 0, %s9, %s7
  $region1: #{tpu_custom_call.1} parent=0
    #allocation2 [shape = 'u8[8192]{0}', space=vmem, size = 0x2000, scoped, tag = 'input window, operand 0, single buffered']
    #allocation3 [shape = 's32[1]{0}', space=sflag, size = 0x4, scoped, tag = 'scoped memory for tpu_custom_call.1']
    #allocation4 [shape = 's32[1]{0}', space=sflag, size = 0x4, scoped, tag = 'scoped memory for tpu_custom_call.1']
    #allocation5 [shape = 'u8[131072]{0}', space=vmem, size = 0x20000, scoped, tag = 'input window, operand 1, single buffered']
    #allocation6 [shape = 's32[1]{0}', space=sflag, size = 0x4, scoped, tag = 'scoped memory for tpu_custom_call.1']
    #allocation7 [shape = 'u8[131072]{0}', space=vmem, size = 0x20000, scoped, tag = 'input window, operand 3, single buffered']
    #allocation8 [shape = 'u8[262144]{0}', space=vmem, size = 0x40000, scoped, tag = 'input window, operand 4, single buffered']
    #allocation9 [shape = 's32[1]{0}', space=sflag, size = 0x4, scoped, tag = 'scoped memory for tpu_custom_call.1']
    #allocation10 [shape = 'u8[131072]{0}', space=vmem, size = 0x20000, scoped, tag = 'input window, operand 5, single buffered']
    #allocation11 [shape = 'u8[8192]{0}', space=vmem, size = 0x2000, scoped, tag = 'output window, operand 0, single buffered']
    %11 = vsyncpa [#allocation3], 0
    %12 = vsyncpa [#allocation6], 0
    %13 = vsyncpa [#allocation9], 0
    %14 = vsyncpa [#allocation4], 0
    // Predicated region
    $region2: #{tpu_custom_call.1} parent=1 // pred_check
      _
    $region3: #{tpu_custom_call.1} parent=1 // pred_check_branch
      %16 = sbr.rel (0) target = $region5
    $region4: #{tpu_custom_call.1} parent=1 // pred_region
      %s18 = ssub.s32 256, 256
      %19 = vsyncadd [#allocation3], %s18
      %s20 = sshll.u32 [#allocation2], 4
      %s21 = int_to_ptr.vmem [resolvable:$true] %s20
      %26 = dma.hbm_to_vmem [thread:$0]  %s0, 256, %s21, [#allocation3], 128, 128, 8
    $region5: #{tpu_custom_call.1} parent=1 // pred_fallthru
      _
    // Predicated region
    $region6: #{tpu_custom_call.1} parent=1 // pred_check
      _
    $region7: #{tpu_custom_call.1} parent=1 // pred_check_branch
      %28 = sbr.rel (0) target = $region9
    $region8: #{tpu_custom_call.1} parent=1 // pred_region
      %s30 = ssub.s32 4096, 4096
      %31 = vsyncadd [#allocation6], %s30
      %s32 = sshll.u32 [#allocation5], 4
      %s33 = int_to_ptr.vmem [resolvable:$true] %s32
      %38 = dma.hbm_to_vmem [thread:$0]  %s1, 4096, %s33, [#allocation6], 128, 128, 8
    $region9: #{tpu_custom_call.1} parent=1 // pred_fallthru
      _
    // Predicated region
    $region10: #{tpu_custom_call.1} parent=1 // pred_check
      _
    $region11: #{tpu_custom_call.1} parent=1 // pred_check_branch
      %40 = sbr.rel (0) target = $region13
    $region12: #{tpu_custom_call.1} parent=1 // pred_region
      _
    $region13: #{tpu_custom_call.1} parent=1 // pred_fallthru
      _
    // Predicated region
    $region14: #{tpu_custom_call.1} parent=1 // pred_check
      _
    $region15: #{tpu_custom_call.1} parent=1 // pred_check_branch
      %42 = sbr.rel (0) target = $region17
    $region16: #{tpu_custom_call.1} parent=1 // pred_region
      %s44 = ssub.s32 4096, 4096
      %45 = vsyncadd [#allocation6], %s44
      %s46 = sshll.u32 [#allocation7], 4
      %s47 = int_to_ptr.vmem [resolvable:$true] %s46
      %52 = dma.hbm_to_vmem [thread:$0]  %s3, 4096, %s47, [#allocation6], 256, 256, 16
    $region17: #{tpu_custom_call.1} parent=1 // pred_fallthru
      _
    // Predicated region
    $region18: #{tpu_custom_call.1} parent=1 // pred_check
      _
    $region19: #{tpu_custom_call.1} parent=1 // pred_check_branch
      %54 = sbr.rel (0) target = $region21
    $region20: #{tpu_custom_call.1} parent=1 // pred_region
      %s56 = ssub.s32 8192, 8192
      %57 = vsyncadd [#allocation9], %s56
      %s58 = sshll.u32 [#allocation8], 4
      %s59 = int_to_ptr.vmem [resolvable:$true] %s58
      %64 = dma.hbm_to_vmem [thread:$0]  %s4, 8192, %s59, [#allocation9], 512, 512, 32
    $region21: #{tpu_custom_call.1} parent=1 // pred_fallthru
      _
    // Predicated region
    $region22: #{tpu_custom_call.1} parent=1 // pred_check
      _
    $region23: #{tpu_custom_call.1} parent=1 // pred_check_branch
      %66 = sbr.rel (0) target = $region25
    $region24: #{tpu_custom_call.1} parent=1 // pred_region
      %s68 = ssub.s32 4096, 4096
      %69 = vsyncadd [#allocation9], %s68
      %s70 = sshll.u32 [#allocation10], 4
      %s71 = int_to_ptr.vmem [resolvable:$true] %s70
      %76 = dma.hbm_to_vmem [thread:$0]  %s5, 4096, %s71, [#allocation9], 128, 128, 8
    $region25: #{tpu_custom_call.1} parent=1 // pred_fallthru
      _
    // Predicated region
    $region26: #{tpu_custom_call.1} parent=1 // pred_check
      _
    $region27: #{tpu_custom_call.1} parent=1 // pred_check_branch
      %78 = sbr.rel (0) target = $region29
    $region28: #{tpu_custom_call.1} parent=1 // pred_region
      %79 = dma.done [#allocation3], 256
    $region29: #{tpu_custom_call.1} parent=1 // pred_fallthru
      _
    // Predicated region
    $region30: #{tpu_custom_call.1} parent=1 // pred_check
      _
    $region31: #{tpu_custom_call.1} parent=1 // pred_check_branch
      %81 = sbr.rel (0) target = $region33
    $region32: #{tpu_custom_call.1} parent=1 // pred_region
      %82 = dma.done [#allocation6], 4096
    $region33: #{tpu_custom_call.1} parent=1 // pred_fallthru
      _
    // Predicated region
    $region34: #{tpu_custom_call.1} parent=1 // pred_check
      _
    $region35: #{tpu_custom_call.1} parent=1 // pred_check_branch
      %84 = sbr.rel (0) target = $region37
    $region36: #{tpu_custom_call.1} parent=1 // pred_region
      %85 = dma.done [#allocation6], 4096
    $region37: #{tpu_custom_call.1} parent=1 // pred_fallthru
      _
    // Predicated region
    $region38: #{tpu_custom_call.1} parent=1 // pred_check
      _
    $region39: #{tpu_custom_call.1} parent=1 // pred_check_branch
      %87 = sbr.rel (0) target = $region41
    $region40: #{tpu_custom_call.1} parent=1 // pred_region
      %88 = dma.done [#allocation9], 8192
    $region41: #{tpu_custom_call.1} parent=1 // pred_fallthru
      _
    // Predicated region
    $region42: #{tpu_custom_call.1} parent=1 // pred_check
      _
    $region43: #{tpu_custom_call.1} parent=1 // pred_check_branch
      %90 = sbr.rel (0) target = $region45
    $region44: #{tpu_custom_call.1} parent=1 // pred_region
      %91 = dma.done [#allocation9], 4096
    $region45: #{tpu_custom_call.1} parent=1 // pred_fallthru
      _
    %v92 = vld [vmem:[#allocation2] sm:$0xff]
    %v93 = vld [vmem:[#allocation2 + $0x8] sm:$0xff]
    %v94 = vld [vmem:[#allocation5] sm:$0xff]
    %v95 = vld [vmem:[#allocation5 + $0x8] sm:$0xff]
    %v96 = vld [vmem:[#allocation5 + $0x10] sm:$0xff]
    %v97 = vld [vmem:[#allocation5 + $0x18] sm:$0xff]
    %v98 = vld [vmem:[#allocation5 + $0x20] sm:$0xff]
    %v99 = vld [vmem:[#allocation5 + $0x28] sm:$0xff]
    %v100 = vld [vmem:[#allocation5 + $0x30] sm:$0xff]
    %v101 = vld [vmem:[#allocation5 + $0x38] sm:$0xff]
    %v102 = vld [vmem:[#allocation5 + $0x40] sm:$0xff]
    %v103 = vld [vmem:[#allocation5 + $0x48] sm:$0xff]
    %v104 = vld [vmem:[#allocation5 + $0x50] sm:$0xff]
    %v105 = vld [vmem:[#allocation5 + $0x58] sm:$0xff]
    %v106 = vld [vmem:[#allocation5 + $0x60] sm:$0xff]
    %v107 = vld [vmem:[#allocation5 + $0x68] sm:$0xff]
    %v108 = vld [vmem:[#allocation5 + $0x70] sm:$0xff]
    %v109 = vld [vmem:[#allocation5 + $0x78] sm:$0xff]
    %v110 = vld [vmem:[#allocation5 + $0x80] sm:$0xff]
    %v111 = vld [vmem:[#allocation5 + $0x88] sm:$0xff]
    %v112 = vld [vmem:[#allocation5 + $0x90] sm:$0xff]
    %v113 = vld [vmem:[#allocation5 + $0x98] sm:$0xff]
    %v114 = vld [vmem:[#allocation5 + $0xa0] sm:$0xff]
    %v115 = vld [vmem:[#allocation5 + $0xa8] sm:$0xff]
    %v116 = vld [vmem:[#allocation5 + $0xb0] sm:$0xff]
    %v117 = vld [vmem:[#allocation5 + $0xb8] sm:$0xff]
    %v118 = vld [vmem:[#allocation5 + $0xc0] sm:$0xff]
    %v119 = vld [vmem:[#allocation5 + $0xc8] sm:$0xff]
    %v120 = vld [vmem:[#allocation5 + $0xd0] sm:$0xff]
    %v121 = vld [vmem:[#allocation5 + $0xd8] sm:$0xff]
    %v122 = vld [vmem:[#allocation5 + $0xe0] sm:$0xff]
    %v123 = vld [vmem:[#allocation5 + $0xe8] sm:$0xff]
    %v124 = vld [vmem:[#allocation5 + $0xf0] sm:$0xff]
    %v125 = vld [vmem:[#allocation5 + $0xf8] sm:$0xff]
    %v126 = vld [vmem:[#allocation7] sm:$0xff]
    %v127 = vld [vmem:[#allocation7 + $0x8] sm:$0xff]
    %v128 = vld [vmem:[#allocation7 + $0x10] sm:$0xff]
    %v129 = vld [vmem:[#allocation7 + $0x18] sm:$0xff]
    %v130 = vld [vmem:[#allocation7 + $0x20] sm:$0xff]
    %v131 = vld [vmem:[#allocation7 + $0x28] sm:$0xff]
    %v132 = vld [vmem:[#allocation7 + $0x30] sm:$0xff]
    %v133 = vld [vmem:[#allocation7 + $0x38] sm:$0xff]
    %v134 = vld [vmem:[#allocation7 + $0x40] sm:$0xff]
    %v135 = vld [vmem:[#allocation7 + $0x48] sm:$0xff]
    %v136 = vld [vmem:[#allocation7 + $0x50] sm:$0xff]
    %v137 = vld [vmem:[#allocation7 + $0x58] sm:$0xff]
    %v138 = vld [vmem:[#allocation7 + $0x60] sm:$0xff]
    %v139 = vld [vmem:[#allocation7 + $0x68] sm:$0xff]
    %v140 = vld [vmem:[#allocation7 + $0x70] sm:$0xff]
    %v141 = vld [vmem:[#allocation7 + $0x78] sm:$0xff]
    %v142 = vld [vmem:[#allocation7 + $0x80] sm:$0xff]
    %v143 = vld [vmem:[#allocation7 + $0x88] sm:$0xff]
    %v144 = vld [vmem:[#allocation7 + $0x90] sm:$0xff]
    %v145 = vld [vmem:[#allocation7 + $0x98] sm:$0xff]
    %v146 = vld [vmem:[#allocation7 + $0xa0] sm:$0xff]
    %v147 = vld [vmem:[#allocation7 + $0xa8] sm:$0xff]
    %v148 = vld [vmem:[#allocation7 + $0xb0] sm:$0xff]
    %v149 = vld [vmem:[#allocation7 + $0xb8] sm:$0xff]
    %v150 = vld [vmem:[#allocation7 + $0xc0] sm:$0xff]
    %v151 = vld [vmem:[#allocation7 + $0xc8] sm:$0xff]
    %v152 = vld [vmem:[#allocation7 + $0xd0] sm:$0xff]
    %v153 = vld [vmem:[#allocation7 + $0xd8] sm:$0xff]
    %v154 = vld [vmem:[#allocation7 + $0xe0] sm:$0xff]
    %v155 = vld [vmem:[#allocation7 + $0xe8] sm:$0xff]
    %v156 = vld [vmem:[#allocation7 + $0xf0] sm:$0xff]
    %v157 = vld [vmem:[#allocation7 + $0xf8] sm:$0xff]
    %158 = vmatprep.subr.mxu0 %v127
    %159 = vmatpush1.msra.mxu0 %v126
    %160 = vmatprep.subr.mxu0 %v129
    %161 = vmatpush1.msra.mxu0 %v128
    %162 = vmatprep.subr.mxu0 %v131
    %163 = vmatpush1.msra.mxu0 %v130
    %164 = vmatprep.subr.mxu0 %v133
    %165 = vmatpush1.msra.mxu0 %v132
    %166 = vmatprep.subr.mxu0 %v135
    %167 = vmatpush1.msra.mxu0 %v134
    %168 = vmatprep.subr.mxu0 %v137
    %169 = vmatpush1.msra.mxu0 %v136
    %170 = vmatprep.subr.mxu0 %v139
    %171 = vmatpush1.msra.mxu0 %v138
    %172 = vmatprep.subr.mxu0 %v141
    %173 = vmatpush1.msra.mxu0 %v140
    %174 = vmatprep.subr.mxu0 %v143
    %175 = vmatpush1.msra.mxu0 %v142
    %176 = vmatprep.subr.mxu0 %v145
    %177 = vmatpush1.msra.mxu0 %v144
    %178 = vmatprep.subr.mxu0 %v147
    %179 = vmatpush1.msra.mxu0 %v146
    %180 = vmatprep.subr.mxu0 %v149
    %181 = vmatpush1.msra.mxu0 %v148
    %182 = vmatprep.subr.mxu0 %v151
    %183 = vmatpush1.msra.mxu0 %v150
    %184 = vmatprep.subr.mxu0 %v153
    %185 = vmatpush1.msra.mxu0 %v152
    %186 = vmatprep.subr.mxu0 %v155
    %187 = vmatpush1.msra.mxu0 %v154
    %188 = vmatprep.subr.mxu0 %v157
    %189 = vmatpush1.msra.mxu0 %v156
    %190 = vmatprep.subr.mxu0 0.0
    %191 = vmatpush1.msra.mxu0 0.0
    %192 = vmatprep.subr.mxu0 0.0
    %193 = vmatpush1.msra.mxu0 0.0
    %194 = vmatprep.subr.mxu0 0.0
    %195 = vmatpush1.msra.mxu0 0.0
    %196 = vmatprep.subr.mxu0 0.0
    %197 = vmatpush1.msra.mxu0 0.0
    %198 = vmatprep.subr.mxu0 0.0
    %199 = vmatpush1.msra.mxu0 0.0
    %200 = vmatprep.subr.mxu0 0.0
    %201 = vmatpush1.msra.mxu0 0.0
    %202 = vmatprep.subr.mxu0 0.0
    %203 = vmatpush1.msra.mxu0 0.0
    %204 = vmatprep.subr.mxu0 0.0
    %205 = vmatpush1.msra.mxu0 0.0
    %206 = vmatprep.subr.mxu0 0.0
    %207 = vmatpush1.msra.mxu0 0.0
    %208 = vmatprep.subr.mxu0 0.0
    %209 = vmatpush1.msra.mxu0 0.0
    %210 = vmatprep.subr.mxu0 0.0
    %211 = vmatpush1.msra.mxu0 0.0
    %212 = vmatprep.subr.mxu0 0.0
    %213 = vmatpush1.msra.mxu0 0.0
    %214 = vmatprep.subr.mxu0 0.0
    %215 = vmatpush1.msra.mxu0 0.0
    %216 = vmatprep.subr.mxu0 0.0
    %217 = vmatpush1.msra.mxu0 0.0
    %218 = vmatprep.subr.mxu0 0.0
    %219 = vmatpush1.msra.mxu0 0.0
    %220 = vmatprep.subr.mxu0 0.0
    %221 = vmatpush1.msra.mxu0 0.0
    %222 = vmatprep.mubr.f32.mxu0 0.0
    %223 = vmatmul.mubr.f32.gmra.mrb[0].mxu0 %v92
    %v224 = vpop.f32.mrb[0].mxu0
    %v225 = vadd.f32 0.0, %v224
    %v226 = vpop.f32.mrb[0].mxu0
    %v227 = vadd.f32 0.0, %v226
    %228 = vmatprep.mubr.f32.mxu0 0.0
    %229 = vmatmul.mubr.f32.gmra.mrb[0].mxu0 %v93
    %v230 = vpop.f32.mrb[0].mxu0
    %v231 = vadd.f32 0.0, %v230
    %v232 = vpop.f32.mrb[0].mxu0
    %v233 = vadd.f32 0.0, %v232
    %234 = vdwg.mxu0
    %v235 = vmul.f32 %v225, 0.125
    %v236 = vmul.f32 %v227, 0.125
    %v237 = vmul.f32 %v231, 0.125
    %v238 = vmul.f32 %v233, 0.125
    %v239 = vld [vmem:[#allocation8] sm:$0xff]
    %v240 = vld [vmem:[#allocation8 + $0x8] sm:$0xff]
    %v241 = vld [vmem:[#allocation8 + $0x10] sm:$0xff]
    %v242 = vld [vmem:[#allocation8 + $0x18] sm:$0xff]
    %v243 = vld [vmem:[#allocation8 + $0x20] sm:$0xff]
    %v244 = vld [vmem:[#allocation8 + $0x28] sm:$0xff]
    %v245 = vld [vmem:[#allocation8 + $0x30] sm:$0xff]
    %v246 = vld [vmem:[#allocation8 + $0x38] sm:$0xff]
    %v247 = vld [vmem:[#allocation8 + $0x40] sm:$0xff]
    %v248 = vld [vmem:[#allocation8 + $0x48] sm:$0xff]
    %v249 = vld [vmem:[#allocation8 + $0x50] sm:$0xff]
    %v250 = vld [vmem:[#allocation8 + $0x58] sm:$0xff]
    %v251 = vld [vmem:[#allocation8 + $0x60] sm:$0xff]
    %v252 = vld [vmem:[#allocation8 + $0x68] sm:$0xff]
    %v253 = vld [vmem:[#allocation8 + $0x70] sm:$0xff]
    %v254 = vld [vmem:[#allocation8 + $0x78] sm:$0xff]
    %v255 = vld [vmem:[#allocation8 + $0x80] sm:$0xff]
    %v256 = vld [vmem:[#allocation8 + $0x88] sm:$0xff]
    %v257 = vld [vmem:[#allocation8 + $0x90] sm:$0xff]
    %v258 = vld [vmem:[#allocation8 + $0x98] sm:$0xff]
    %v259 = vld [vmem:[#allocation8 + $0xa0] sm:$0xff]
    %v260 = vld [vmem:[#allocation8 + $0xa8] sm:$0xff]
    %v261 = vld [vmem:[#allocation8 + $0xb0] sm:$0xff]
    %v262 = vld [vmem:[#allocation8 + $0xb8] sm:$0xff]
    %v263 = vld [vmem:[#allocation8 + $0xc0] sm:$0xff]
    %v264 = vld [vmem:[#allocation8 + $0xc8] sm:$0xff]
    %v265 = vld [vmem:[#allocation8 + $0xd0] sm:$0xff]
    %v266 = vld [vmem:[#allocation8 + $0xd8] sm:$0xff]
    %v267 = vld [vmem:[#allocation8 + $0xe0] sm:$0xff]
    %v268 = vld [vmem:[#allocation8 + $0xe8] sm:$0xff]
    %v269 = vld [vmem:[#allocation8 + $0xf0] sm:$0xff]
    %v270 = vld [vmem:[#allocation8 + $0xf8] sm:$0xff]
    %v271 = vld [vmem:[#allocation8 + $0x100] sm:$0xff]
    %v272 = vld [vmem:[#allocation8 + $0x108] sm:$0xff]
    %v273 = vld [vmem:[#allocation8 + $0x110] sm:$0xff]
    %v274 = vld [vmem:[#allocation8 + $0x118] sm:$0xff]
    %v275 = vld [vmem:[#allocation8 + $0x120] sm:$0xff]
    %v276 = vld [vmem:[#allocation8 + $0x128] sm:$0xff]
    %v277 = vld [vmem:[#allocation8 + $0x130] sm:$0xff]
    %v278 = vld [vmem:[#allocation8 + $0x138] sm:$0xff]
    %v279 = vld [vmem:[#allocation8 + $0x140] sm:$0xff]
    %v280 = vld [vmem:[#allocation8 + $0x148] sm:$0xff]
    %v281 = vld [vmem:[#allocation8 + $0x150] sm:$0xff]
    %v282 = vld [vmem:[#allocation8 + $0x158] sm:$0xff]
    %v283 = vld [vmem:[#allocation8 + $0x160] sm:$0xff]
    %v284 = vld [vmem:[#allocation8 + $0x168] sm:$0xff]
    %v285 = vld [vmem:[#allocation8 + $0x170] sm:$0xff]
    %v286 = vld [vmem:[#allocation8 + $0x178] sm:$0xff]
    %v287 = vld [vmem:[#allocation8 + $0x180] sm:$0xff]
    %v288 = vld [vmem:[#allocation8 + $0x188] sm:$0xff]
    %v289 = vld [vmem:[#allocation8 + $0x190] sm:$0xff]
    %v290 = vld [vmem:[#allocation8 + $0x198] sm:$0xff]
    %v291 = vld [vmem:[#allocation8 + $0x1a0] sm:$0xff]
    %v292 = vld [vmem:[#allocation8 + $0x1a8] sm:$0xff]
    %v293 = vld [vmem:[#allocation8 + $0x1b0] sm:$0xff]
    %v294 = vld [vmem:[#allocation8 + $0x1b8] sm:$0xff]
    %v295 = vld [vmem:[#allocation8 + $0x1c0] sm:$0xff]
    %v296 = vld [vmem:[#allocation8 + $0x1c8] sm:$0xff]
    %v297 = vld [vmem:[#allocation8 + $0x1d0] sm:$0xff]
    %v298 = vld [vmem:[#allocation8 + $0x1d8] sm:$0xff]
    %v299 = vld [vmem:[#allocation8 + $0x1e0] sm:$0xff]
    %v300 = vld [vmem:[#allocation8 + $0x1e8] sm:$0xff]
    %v301 = vld [vmem:[#allocation8 + $0x1f0] sm:$0xff]
    %v302 = vld [vmem:[#allocation8 + $0x1f8] sm:$0xff]
    %303 = vmatprep.subr.mxu0 %v240
    %304 = vmatpush1.msra.mxu0 %v239
    %305 = vmatprep.subr.mxu0 %v244
    %306 = vmatpush1.msra.mxu0 %v243
    %307 = vmatprep.subr.mxu0 %v248
    %308 = vmatpush1.msra.mxu0 %v247
    %309 = vmatprep.subr.mxu0 %v252
    %310 = vmatpush1.msra.mxu0 %v251
    %311 = vmatprep.subr.mxu0 %v256
    %312 = vmatpush1.msra.mxu0 %v255
    %313 = vmatprep.subr.mxu0 %v260
    %314 = vmatpush1.msra.mxu0 %v259
    %315 = vmatprep.subr.mxu0 %v264
    %316 = vmatpush1.msra.mxu0 %v263
    %317 = vmatprep.subr.mxu0 %v268
    %318 = vmatpush1.msra.mxu0 %v267
    %319 = vmatprep.subr.mxu0 %v272
    %320 = vmatpush1.msra.mxu0 %v271
    %321 = vmatprep.subr.mxu0 %v276
    %322 = vmatpush1.msra.mxu0 %v275
    %323 = vmatprep.subr.mxu0 %v280
    %324 = vmatpush1.msra.mxu0 %v279
    %325 = vmatprep.subr.mxu0 %v284
    %326 = vmatpush1.msra.mxu0 %v283
    %327 = vmatprep.subr.mxu0 %v288
    %328 = vmatpush1.msra.mxu0 %v287
    %329 = vmatprep.subr.mxu0 %v292
    %330 = vmatpush1.msra.mxu0 %v291
    %331 = vmatprep.subr.mxu0 %v296
    %332 = vmatpush1.msra.mxu0 %v295
    %333 = vmatprep.subr.mxu0 %v300
    %334 = vmatpush1.msra.mxu0 %v299
    %335 = vmatprep.subr.mxu0 0.0
    %336 = vmatpush1.msra.mxu0 0.0
    %337 = vmatprep.subr.mxu0 0.0
    %338 = vmatpush1.msra.mxu0 0.0
    %339 = vmatprep.subr.mxu0 0.0
    %340 = vmatpush1.msra.mxu0 0.0
    %341 = vmatprep.subr.mxu0 0.0
    %342 = vmatpush1.msra.mxu0 0.0
    %343 = vmatprep.subr.mxu0 0.0
    %344 = vmatpush1.msra.mxu0 0.0
    %345 = vmatprep.subr.mxu0 0.0
    %346 = vmatpush1.msra.mxu0 0.0
    %347 = vmatprep.subr.mxu0 0.0
    %348 = vmatpush1.msra.mxu0 0.0
    %349 = vmatprep.subr.mxu0 0.0
    %350 = vmatpush1.msra.mxu0 0.0
    %351 = vmatprep.subr.mxu0 0.0
    %352 = vmatpush1.msra.mxu0 0.0
    %353 = vmatprep.subr.mxu0 0.0
    %354 = vmatpush1.msra.mxu0 0.0
    %355 = vmatprep.subr.mxu0 0.0
    %356 = vmatpush1.msra.mxu0 0.0
    %357 = vmatprep.subr.mxu0 0.0
    %358 = vmatpush1.msra.mxu0 0.0
    %359 = vmatprep.subr.mxu0 0.0
    %360 = vmatpush1.msra.mxu0 0.0
    %361 = vmatprep.subr.mxu0 0.0
    %362 = vmatpush1.msra.mxu0 0.0
    %363 = vmatprep.subr.mxu0 0.0
    %364 = vmatpush1.msra.mxu0 0.0
    %365 = vmatprep.subr.mxu0 0.0
    %366 = vmatpush1.msra.mxu0 0.0
    %367 = vmatprep.mubr.f32.mxu0 0.0
    %368 = vmatmul.mubr.f32.gmra.mrb[0].mxu0 %v94
    %v369 = vpop.f32.mrb[0].mxu0
    %v370 = vadd.f32 0.0, %v369
    %v371 = vpop.f32.mrb[0].mxu0
    %v372 = vadd.f32 0.0, %v371
    %373 = vmatprep.mubr.f32.mxu0 0.0
    %374 = vmatmul.mubr.f32.gmra.mrb[0].mxu0 %v95
    %v375 = vpop.f32.mrb[0].mxu0
    %v376 = vadd.f32 0.0, %v375
    %v377 = vpop.f32.mrb[0].mxu0
    %v378 = vadd.f32 0.0, %v377
    %379 = vmatprep.mubr.f32.mxu0 0.0
    %380 = vmatmul.mubr.f32.gmra.mrb[0].mxu0 %v96
    %v381 = vpop.f32.mrb[0].mxu0
    %v382 = vadd.f32 0.0, %v381
    %v383 = vpop.f32.mrb[0].mxu0
    %v384 = vadd.f32 0.0, %v383
    %385 = vmatprep.mubr.f32.mxu0 0.0
    %386 = vmatmul.mubr.f32.gmra.mrb[0].mxu0 %v97
    %v387 = vpop.f32.mrb[0].mxu0
    %v388 = vadd.f32 0.0, %v387
    %v389 = vpop.f32.mrb[0].mxu0
    %v390 = vadd.f32 0.0, %v389
    %391 = vmatprep.mubr.f32.mxu0 0.0
    %392 = vmatmul.mubr.f32.gmra.mrb[0].mxu0 %v98
    %v393 = vpop.f32.mrb[0].mxu0
    %v394 = vadd.f32 0.0, %v393
    %v395 = vpop.f32.mrb[0].mxu0
    %v396 = vadd.f32 0.0, %v395
    %397 = vmatprep.mubr.f32.mxu0 0.0
    %398 = vmatmul.mubr.f32.gmra.mrb[0].mxu0 %v99
    %v399 = vpop.f32.mrb[0].mxu0
    %v400 = vadd.f32 0.0, %v399
    %v401 = vpop.f32.mrb[0].mxu0
    %v402 = vadd.f32 0.0, %v401
    %403 = vmatprep.mubr.f32.mxu0 0.0
    %404 = vmatmul.mubr.f32.gmra.mrb[0].mxu0 %v100
    %v405 = vpop.f32.mrb[0].mxu0
    %v406 = vadd.f32 0.0, %v405
    %v407 = vpop.f32.mrb[0].mxu0
    %v408 = vadd.f32 0.0, %v407
    %409 = vmatprep.mubr.f32.mxu0 0.0
    %410 = vmatmul.mubr.f32.gmra.mrb[0].mxu0 %v101
    %v411 = vpop.f32.mrb[0].mxu0
    %v412 = vadd.f32 0.0, %v411
    %v413 = vpop.f32.mrb[0].mxu0
    %v414 = vadd.f32 0.0, %v413
    %415 = vmatprep.mubr.f32.mxu0 0.0
    %416 = vmatmul.mubr.f32.gmra.mrb[0].mxu0 %v102
    %v417 = vpop.f32.mrb[0].mxu0
    %v418 = vadd.f32 0.0, %v417
    %v419 = vpop.f32.mrb[0].mxu0
    %v420 = vadd.f32 0.0, %v419
    %421 = vmatprep.mubr.f32.mxu0 0.0
    %422 = vmatmul.mubr.f32.gmra.mrb[0].mxu0 %v103
    %v423 = vpop.f32.mrb[0].mxu0
    %v424 = vadd.f32 0.0, %v423
    %v425 = vpop.f32.mrb[0].mxu0
    %v426 = vadd.f32 0.0, %v425
    %427 = vmatprep.mubr.f32.mxu0 0.0
    %428 = vmatmul.mubr.f32.gmra.mrb[0].mxu0 %v104
    %v429 = vpop.f32.mrb[0].mxu0
    %v430 = vadd.f32 0.0, %v429
    %v431 = vpop.f32.mrb[0].mxu0
    %v432 = vadd.f32 0.0, %v431
    %433 = vmatprep.mubr.f32.mxu0 0.0
    %434 = vmatmul.mubr.f32.gmra.mrb[0].mxu0 %v105
    %v435 = vpop.f32.mrb[0].mxu0
    %v436 = vadd.f32 0.0, %v435
    %v437 = vpop.f32.mrb[0].mxu0
    %v438 = vadd.f32 0.0, %v437
    %439 = vmatprep.mubr.f32.mxu0 0.0
    %440 = vmatmul.mubr.f32.gmra.mrb[0].mxu0 %v106
    %v441 = vpop.f32.mrb[0].mxu0
    %v442 = vadd.f32 0.0, %v441
    %v443 = vpop.f32.mrb[0].mxu0
    %v444 = vadd.f32 0.0, %v443
    %445 = vmatprep.mubr.f32.mxu0 0.0
    %446 = vmatmul.mubr.f32.gmra.mrb[0].mxu0 %v107
    %v447 = vpop.f32.mrb[0].mxu0
    %v448 = vadd.f32 0.0, %v447
    %v449 = vpop.f32.mrb[0].mxu0
    %v450 = vadd.f32 0.0, %v449
    %451 = vmatprep.mubr.f32.mxu0 0.0
    %452 = vmatmul.mubr.f32.gmra.mrb[0].mxu0 %v108
    %v453 = vpop.f32.mrb[0].mxu0
    %v454 = vadd.f32 0.0, %v453
    %v455 = vpop.f32.mrb[0].mxu0
    %v456 = vadd.f32 0.0, %v455
    %457 = vmatprep.mubr.f32.mxu0 0.0
    %458 = vmatmul.mubr.f32.gmra.mrb[0].mxu0 %v109
    %v459 = vpop.f32.mrb[0].mxu0
    %v460 = vadd.f32 0.0, %v459
    %v461 = vpop.f32.mrb[0].mxu0
    %v462 = vadd.f32 0.0, %v461
    %463 = vmatprep.mubr.f32.mxu0 0.0
    %464 = vmatmul.mubr.f32.gmra.mrb[0].mxu0 %v110
    %v465 = vpop.f32.mrb[0].mxu0
    %v466 = vadd.f32 0.0, %v465
    %v467 = vpop.f32.mrb[0].mxu0
    %v468 = vadd.f32 0.0, %v467
    %469 = vmatprep.mubr.f32.mxu0 0.0
    %470 = vmatmul.mubr.f32.gmra.mrb[0].mxu0 %v111
    %v471 = vpop.f32.mrb[0].mxu0
    %v472 = vadd.f32 0.0, %v471
    %v473 = vpop.f32.mrb[0].mxu0
    %v474 = vadd.f32 0.0, %v473
    %475 = vmatprep.mubr.f32.mxu0 0.0
    %476 = vmatmul.mubr.f32.gmra.mrb[0].mxu0 %v112
    %v477 = vpop.f32.mrb[0].mxu0
    %v478 = vadd.f32 0.0, %v477
    %v479 = vpop.f32.mrb[0].mxu0
    %v480 = vadd.f32 0.0, %v479
    %481 = vmatprep.mubr.f32.mxu0 0.0
    %482 = vmatmul.mubr.f32.gmra.mrb[0].mxu0 %v113
    %v483 = vpop.f32.mrb[0].mxu0
    %v484 = vadd.f32 0.0, %v483
    %v485 = vpop.f32.mrb[0].mxu0
    %v486 = vadd.f32 0.0, %v485
    %487 = vmatprep.mubr.f32.mxu0 0.0
    %488 = vmatmul.mubr.f32.gmra.mrb[0].mxu0 %v114
    %v489 = vpop.f32.mrb[0].mxu0
    %v490 = vadd.f32 0.0, %v489
    %v491 = vpop.f32.mrb[0].mxu0
    %v492 = vadd.f32 0.0, %v491
    %493 = vmatprep.mubr.f32.mxu0 0.0
    %494 = vmatmul.mubr.f32.gmra.mrb[0].mxu0 %v115
    %v495 = vpop.f32.mrb[0].mxu0
    %v496 = vadd.f32 0.0, %v495
    %v497 = vpop.f32.mrb[0].mxu0
    %v498 = vadd.f32 0.0, %v497
    %499 = vmatprep.mubr.f32.mxu0 0.0
    %500 = vmatmul.mubr.f32.gmra.mrb[0].mxu0 %v116
    %v501 = vpop.f32.mrb[0].mxu0
    %v502 = vadd.f32 0.0, %v501
    %v503 = vpop.f32.mrb[0].mxu0
    %v504 = vadd.f32 0.0, %v503
    %505 = vmatprep.mubr.f32.mxu0 0.0
    %506 = vmatmul.mubr.f32.gmra.mrb[0].mxu0 %v117
    %v507 = vpop.f32.mrb[0].mxu0
    %v508 = vadd.f32 0.0, %v507
    %v509 = vpop.f32.mrb[0].mxu0
    %v510 = vadd.f32 0.0, %v509
    %511 = vmatprep.mubr.f32.mxu0 0.0
    %512 = vmatmul.mubr.f32.gmra.mrb[0].mxu0 %v118
    %v513 = vpop.f32.mrb[0].mxu0
    %v514 = vadd.f32 0.0, %v513
    %v515 = vpop.f32.mrb[0].mxu0
    %v516 = vadd.f32 0.0, %v515
    %517 = vmatprep.mubr.f32.mxu0 0.0
    %518 = vmatmul.mubr.f32.gmra.mrb[0].mxu0 %v119
    %v519 = vpop.f32.mrb[0].mxu0
    %v520 = vadd.f32 0.0, %v519
    %v521 = vpop.f32.mrb[0].mxu0
    %v522 = vadd.f32 0.0, %v521
    %523 = vmatprep.mubr.f32.mxu0 0.0
    %524 = vmatmul.mubr.f32.gmra.mrb[0].mxu0 %v120
    %v525 = vpop.f32.mrb[0].mxu0
    %v526 = vadd.f32 0.0, %v525
    %v527 = vpop.f32.mrb[0].mxu0
    %v528 = vadd.f32 0.0, %v527
    %529 = vmatprep.mubr.f32.mxu0 0.0
    %530 = vmatmul.mubr.f32.gmra.mrb[0].mxu0 %v121
    %v531 = vpop.f32.mrb[0].mxu0
    %v532 = vadd.f32 0.0, %v531
    %v533 = vpop.f32.mrb[0].mxu0
    %v534 = vadd.f32 0.0, %v533
    %535 = vmatprep.mubr.f32.mxu0 0.0
    %536 = vmatmul.mubr.f32.gmra.mrb[0].mxu0 %v122
    %v537 = vpop.f32.mrb[0].mxu0
    %v538 = vadd.f32 0.0, %v537
    %v539 = vpop.f32.mrb[0].mxu0
    %v540 = vadd.f32 0.0, %v539
    %541 = vmatprep.mubr.f32.mxu0 0.0
    %542 = vmatmul.mubr.f32.gmra.mrb[0].mxu0 %v123
    %v543 = vpop.f32.mrb[0].mxu0
    %v544 = vadd.f32 0.0, %v543
    %v545 = vpop.f32.mrb[0].mxu0
    %v546 = vadd.f32 0.0, %v545
    %547 = vmatprep.mubr.f32.mxu0 0.0
    %548 = vmatmul.mubr.f32.gmra.mrb[0].mxu0 %v124
    %v549 = vpop.f32.mrb[0].mxu0
    %v550 = vadd.f32 0.0, %v549
    %v551 = vpop.f32.mrb[0].mxu0
    %v552 = vadd.f32 0.0, %v551
    %553 = vmatprep.mubr.f32.mxu0 0.0
    %554 = vmatmul.mubr.f32.gmra.mrb[0].mxu0 %v125
    %v555 = vpop.f32.mrb[0].mxu0
    %v556 = vadd.f32 0.0, %v555
    %v557 = vpop.f32.mrb[0].mxu0
    %v558 = vadd.f32 0.0, %v557
    %559 = vdwg.mxu0
    %560 = vmatprep.subr.mxu0 %v242
    %561 = vmatpush1.msra.mxu0 %v241
    %562 = vmatprep.subr.mxu0 %v246
    %563 = vmatpush1.msra.mxu0 %v245
    %564 = vmatprep.subr.mxu0 %v250
    %565 = vmatpush1.msra.mxu0 %v249
    %566 = vmatprep.subr.mxu0 %v254
    %567 = vmatpush1.msra.mxu0 %v253
    %568 = vmatprep.subr.mxu0 %v258
    %569 = vmatpush1.msra.mxu0 %v257
    %570 = vmatprep.subr.mxu0 %v262
    %571 = vmatpush1.msra.mxu0 %v261
    %572 = vmatprep.subr.mxu0 %v266
    %573 = vmatpush1.msra.mxu0 %v265
    %574 = vmatprep.subr.mxu0 %v270
    %575 = vmatpush1.msra.mxu0 %v269
    %576 = vmatprep.subr.mxu0 %v274
    %577 = vmatpush1.msra.mxu0 %v273
    %578 = vmatprep.subr.mxu0 %v278
    %579 = vmatpush1.msra.mxu0 %v277
    %580 = vmatprep.subr.mxu0 %v282
    %581 = vmatpush1.msra.mxu0 %v281
    %582 = vmatprep.subr.mxu0 %v286
    %583 = vmatpush1.msra.mxu0 %v285
    %584 = vmatprep.subr.mxu0 %v290
    %585 = vmatpush1.msra.mxu0 %v289
    %586 = vmatprep.subr.mxu0 %v294
    %587 = vmatpush1.msra.mxu0 %v293
    %588 = vmatprep.subr.mxu0 %v298
    %589 = vmatpush1.msra.mxu0 %v297
    %590 = vmatprep.subr.mxu0 %v302
    %591 = vmatpush1.msra.mxu0 %v301
    %592 = vmatprep.subr.mxu0 0.0
    %593 = vmatpush1.msra.mxu0 0.0
    %594 = vmatprep.subr.mxu0 0.0
    %595 = vmatpush1.msra.mxu0 0.0
    %596 = vmatprep.subr.mxu0 0.0
    %597 = vmatpush1.msra.mxu0 0.0
    %598 = vmatprep.subr.mxu0 0.0
    %599 = vmatpush1.msra.mxu0 0.0
    %600 = vmatprep.subr.mxu0 0.0
    %601 = vmatpush1.msra.mxu0 0.0
    %602 = vmatprep.subr.mxu0 0.0
    %603 = vmatpush1.msra.mxu0 0.0
    %604 = vmatprep.subr.mxu0 0.0
    %605 = vmatpush1.msra.mxu0 0.0
    %606 = vmatprep.subr.mxu0 0.0
    %607 = vmatpush1.msra.mxu0 0.0
    %608 = vmatprep.subr.mxu0 0.0
    %609 = vmatpush1.msra.mxu0 0.0
    %610 = vmatprep.subr.mxu0 0.0
    %611 = vmatpush1.msra.mxu0 0.0
    %612 = vmatprep.subr.mxu0 0.0
    %613 = vmatpush1.msra.mxu0 0.0
    %614 = vmatprep.subr.mxu0 0.0
    %615 = vmatpush1.msra.mxu0 0.0
    %616 = vmatprep.subr.mxu0 0.0
    %617 = vmatpush1.msra.mxu0 0.0
    %618 = vmatprep.subr.mxu0 0.0
    %619 = vmatpush1.msra.mxu0 0.0
    %620 = vmatprep.subr.mxu0 0.0
    %621 = vmatpush1.msra.mxu0 0.0
    %622 = vmatprep.subr.mxu0 0.0
    %623 = vmatpush1.msra.mxu0 0.0
    %624 = vmatprep.mubr.f32.mxu0 0.0
    %625 = vmatmul.mubr.f32.gmra.mrb[0].mxu0 %v94
    %v626 = vpop.f32.mrb[0].mxu0
    %v627 = vadd.f32 0.0, %v626
    %v628 = vpop.f32.mrb[0].mxu0
    %v629 = vadd.f32 0.0, %v628
    %630 = vmatprep.mubr.f32.mxu0 0.0
    %631 = vmatmul.mubr.f32.gmra.mrb[0].mxu0 %v95
    %v632 = vpop.f32.mrb[0].mxu0
    %v633 = vadd.f32 0.0, %v632
    %v634 = vpop.f32.mrb[0].mxu0
    %v635 = vadd.f32 0.0, %v634
    %636 = vmatprep.mubr.f32.mxu0 0.0
    %637 = vmatmul.mubr.f32.gmra.mrb[0].mxu0 %v96
    %v638 = vpop.f32.mrb[0].mxu0
    %v639 = vadd.f32 0.0, %v638
    %v640 = vpop.f32.mrb[0].mxu0
    %v641 = vadd.f32 0.0, %v640
    %642 = vmatprep.mubr.f32.mxu0 0.0
    %643 = vmatmul.mubr.f32.gmra.mrb[0].mxu0 %v97
    %v644 = vpop.f32.mrb[0].mxu0
    %v645 = vadd.f32 0.0, %v644
    %v646 = vpop.f32.mrb[0].mxu0
    %v647 = vadd.f32 0.0, %v646
    %648 = vmatprep.mubr.f32.mxu0 0.0
    %649 = vmatmul.mubr.f32.gmra.mrb[0].mxu0 %v98
    %v650 = vpop.f32.mrb[0].mxu0
    %v651 = vadd.f32 0.0, %v650
    %v652 = vpop.f32.mrb[0].mxu0
    %v653 = vadd.f32 0.0, %v652
    %654 = vmatprep.mubr.f32.mxu0 0.0
    %655 = vmatmul.mubr.f32.gmra.mrb[0].mxu0 %v99
    %v656 = vpop.f32.mrb[0].mxu0
    %v657 = vadd.f32 0.0, %v656
    %v658 = vpop.f32.mrb[0].mxu0
    %v659 = vadd.f32 0.0, %v658
    %660 = vmatprep.mubr.f32.mxu0 0.0
    %661 = vmatmul.mubr.f32.gmra.mrb[0].mxu0 %v100
    %v662 = vpop.f32.mrb[0].mxu0
    %v663 = vadd.f32 0.0, %v662
    %v664 = vpop.f32.mrb[0].mxu0
    %v665 = vadd.f32 0.0, %v664
    %666 = vmatprep.mubr.f32.mxu0 0.0
    %667 = vmatmul.mubr.f32.gmra.mrb[0].mxu0 %v101
    %v668 = vpop.f32.mrb[0].mxu0
    %v669 = vadd.f32 0.0, %v668
    %v670 = vpop.f32.mrb[0].mxu0
    %v671 = vadd.f32 0.0, %v670
    %672 = vmatprep.mubr.f32.mxu0 0.0
    %673 = vmatmul.mubr.f32.gmra.mrb[0].mxu0 %v102
    %v674 = vpop.f32.mrb[0].mxu0
    %v675 = vadd.f32 0.0, %v674
    %v676 = vpop.f32.mrb[0].mxu0
    %v677 = vadd.f32 0.0, %v676
    %678 = vmatprep.mubr.f32.mxu0 0.0
    %679 = vmatmul.mubr.f32.gmra.mrb[0].mxu0 %v103
    %v680 = vpop.f32.mrb[0].mxu0
    %v681 = vadd.f32 0.0, %v680
    %v682 = vpop.f32.mrb[0].mxu0
    %v683 = vadd.f32 0.0, %v682
    %684 = vmatprep.mubr.f32.mxu0 0.0
    %685 = vmatmul.mubr.f32.gmra.mrb[0].mxu0 %v104
    %v686 = vpop.f32.mrb[0].mxu0
    %v687 = vadd.f32 0.0, %v686
    %v688 = vpop.f32.mrb[0].mxu0
    %v689 = vadd.f32 0.0, %v688
    %690 = vmatprep.mubr.f32.mxu0 0.0
    %691 = vmatmul.mubr.f32.gmra.mrb[0].mxu0 %v105
    %v692 = vpop.f32.mrb[0].mxu0
    %v693 = vadd.f32 0.0, %v692
    %v694 = vpop.f32.mrb[0].mxu0
    %v695 = vadd.f32 0.0, %v694
    %696 = vmatprep.mubr.f32.mxu0 0.0
    %697 = vmatmul.mubr.f32.gmra.mrb[0].mxu0 %v106
    %v698 = vpop.f32.mrb[0].mxu0
    %v699 = vadd.f32 0.0, %v698
    %v700 = vpop.f32.mrb[0].mxu0
    %v701 = vadd.f32 0.0, %v700
    %702 = vmatprep.mubr.f32.mxu0 0.0
    %703 = vmatmul.mubr.f32.gmra.mrb[0].mxu0 %v107
    %v704 = vpop.f32.mrb[0].mxu0
    %v705 = vadd.f32 0.0, %v704
    %v706 = vpop.f32.mrb[0].mxu0
    %v707 = vadd.f32 0.0, %v706
    %708 = vmatprep.mubr.f32.mxu0 0.0
    %709 = vmatmul.mubr.f32.gmra.mrb[0].mxu0 %v108
    %v710 = vpop.f32.mrb[0].mxu0
    %v711 = vadd.f32 0.0, %v710
    %v712 = vpop.f32.mrb[0].mxu0
    %v713 = vadd.f32 0.0, %v712
    %714 = vmatprep.mubr.f32.mxu0 0.0
    %715 = vmatmul.mubr.f32.gmra.mrb[0].mxu0 %v109
    %v716 = vpop.f32.mrb[0].mxu0
    %v717 = vadd.f32 0.0, %v716
    %v718 = vpop.f32.mrb[0].mxu0
    %v719 = vadd.f32 0.0, %v718
    %720 = vmatprep.mubr.f32.mxu0 0.0
    %721 = vmatmul.mubr.f32.gmra.mrb[0].mxu0 %v110
    %v722 = vpop.f32.mrb[0].mxu0
    %v723 = vadd.f32 0.0, %v722
    %v724 = vpop.f32.mrb[0].mxu0
    %v725 = vadd.f32 0.0, %v724
    %726 = vmatprep.mubr.f32.mxu0 0.0
    %727 = vmatmul.mubr.f32.gmra.mrb[0].mxu0 %v111
    %v728 = vpop.f32.mrb[0].mxu0
    %v729 = vadd.f32 0.0, %v728
    %v730 = vpop.f32.mrb[0].mxu0
    %v731 = vadd.f32 0.0, %v730
    %732 = vmatprep.mubr.f32.mxu0 0.0
    %733 = vmatmul.mubr.f32.gmra.mrb[0].mxu0 %v112
    %v734 = vpop.f32.mrb[0].mxu0
    %v735 = vadd.f32 0.0, %v734
    %v736 = vpop.f32.mrb[0].mxu0
    %v737 = vadd.f32 0.0, %v736
    %738 = vmatprep.mubr.f32.mxu0 0.0
    %739 = vmatmul.mubr.f32.gmra.mrb[0].mxu0 %v113
    %v740 = vpop.f32.mrb[0].mxu0
    %v741 = vadd.f32 0.0, %v740
    %v742 = vpop.f32.mrb[0].mxu0
    %v743 = vadd.f32 0.0, %v742
    %744 = vmatprep.mubr.f32.mxu0 0.0
    %745 = vmatmul.mubr.f32.gmra.mrb[0].mxu0 %v114
    %v746 = vpop.f32.mrb[0].mxu0
    %v747 = vadd.f32 0.0, %v746
    %v748 = vpop.f32.mrb[0].mxu0
    %v749 = vadd.f32 0.0, %v748
    %750 = vmatprep.mubr.f32.mxu0 0.0
    %751 = vmatmul.mubr.f32.gmra.mrb[0].mxu0 %v115
    %v752 = vpop.f32.mrb[0].mxu0
    %v753 = vadd.f32 0.0, %v752
    %v754 = vpop.f32.mrb[0].mxu0
    %v755 = vadd.f32 0.0, %v754
    %756 = vmatprep.mubr.f32.mxu0 0.0
    %757 = vmatmul.mubr.f32.gmra.mrb[0].mxu0 %v116
    %v758 = vpop.f32.mrb[0].mxu0
    %v759 = vadd.f32 0.0, %v758
    %v760 = vpop.f32.mrb[0].mxu0
    %v761 = vadd.f32 0.0, %v760
    %762 = vmatprep.mubr.f32.mxu0 0.0
    %763 = vmatmul.mubr.f32.gmra.mrb[0].mxu0 %v117
    %v764 = vpop.f32.mrb[0].mxu0
    %v765 = vadd.f32 0.0, %v764
    %v766 = vpop.f32.mrb[0].mxu0
    %v767 = vadd.f32 0.0, %v766
    %768 = vmatprep.mubr.f32.mxu0 0.0
    %769 = vmatmul.mubr.f32.gmra.mrb[0].mxu0 %v118
    %v770 = vpop.f32.mrb[0].mxu0
    %v771 = vadd.f32 0.0, %v770
    %v772 = vpop.f32.mrb[0].mxu0
    %v773 = vadd.f32 0.0, %v772
    %774 = vmatprep.mubr.f32.mxu0 0.0
    %775 = vmatmul.mubr.f32.gmra.mrb[0].mxu0 %v119
    %v776 = vpop.f32.mrb[0].mxu0
    %v777 = vadd.f32 0.0, %v776
    %v778 = vpop.f32.mrb[0].mxu0
    %v779 = vadd.f32 0.0, %v778
    %780 = vmatprep.mubr.f32.mxu0 0.0
    %781 = vmatmul.mubr.f32.gmra.mrb[0].mxu0 %v120
    %v782 = vpop.f32.mrb[0].mxu0
    %v783 = vadd.f32 0.0, %v782
    %v784 = vpop.f32.mrb[0].mxu0
    %v785 = vadd.f32 0.0, %v784
    %786 = vmatprep.mubr.f32.mxu0 0.0
    %787 = vmatmul.mubr.f32.gmra.mrb[0].mxu0 %v121
    %v788 = vpop.f32.mrb[0].mxu0
    %v789 = vadd.f32 0.0, %v788
    %v790 = vpop.f32.mrb[0].mxu0
    %v791 = vadd.f32 0.0, %v790
    %792 = vmatprep.mubr.f32.mxu0 0.0
    %793 = vmatmul.mubr.f32.gmra.mrb[0].mxu0 %v122
    %v794 = vpop.f32.mrb[0].mxu0
    %v795 = vadd.f32 0.0, %v794
    %v796 = vpop.f32.mrb[0].mxu0
    %v797 = vadd.f32 0.0, %v796
    %798 = vmatprep.mubr.f32.mxu0 0.0
    %799 = vmatmul.mubr.f32.gmra.mrb[0].mxu0 %v123
    %v800 = vpop.f32.mrb[0].mxu0
    %v801 = vadd.f32 0.0, %v800
    %v802 = vpop.f32.mrb[0].mxu0
    %v803 = vadd.f32 0.0, %v802
    %804 = vmatprep.mubr.f32.mxu0 0.0
    %805 = vmatmul.mubr.f32.gmra.mrb[0].mxu0 %v124
    %v806 = vpop.f32.mrb[0].mxu0
    %v807 = vadd.f32 0.0, %v806
    %v808 = vpop.f32.mrb[0].mxu0
    %v809 = vadd.f32 0.0, %v808
    %810 = vmatprep.mubr.f32.mxu0 0.0
    %811 = vmatmul.mubr.f32.gmra.mrb[0].mxu0 %v125
    %v812 = vpop.f32.mrb[0].mxu0
    %v813 = vadd.f32 0.0, %v812
    %v814 = vpop.f32.mrb[0].mxu0
    %v815 = vadd.f32 0.0, %v814
    %816 = vdwg.mxu0
    %v817 = vld [vmem:[#allocation10] sm:$0xff]
    %v818 = vld [vmem:[#allocation10 + $0x8] sm:$0xff]
    %v819 = vld [vmem:[#allocation10 + $0x10] sm:$0xff]
    %v820 = vld [vmem:[#allocation10 + $0x18] sm:$0xff]
    %v821 = vld [vmem:[#allocation10 + $0x20] sm:$0xff]
    %v822 = vld [vmem:[#allocation10 + $0x28] sm:$0xff]
    %v823 = vld [vmem:[#allocation10 + $0x30] sm:$0xff]
    %v824 = vld [vmem:[#allocation10 + $0x38] sm:$0xff]
    %v825 = vld [vmem:[#allocation10 + $0x40] sm:$0xff]
    %v826 = vld [vmem:[#allocation10 + $0x48] sm:$0xff]
    %v827 = vld [vmem:[#allocation10 + $0x50] sm:$0xff]
    %v828 = vld [vmem:[#allocation10 + $0x58] sm:$0xff]
    %v829 = vld [vmem:[#allocation10 + $0x60] sm:$0xff]
    %v830 = vld [vmem:[#allocation10 + $0x68] sm:$0xff]
    %v831 = vld [vmem:[#allocation10 + $0x70] sm:$0xff]
    %v832 = vld [vmem:[#allocation10 + $0x78] sm:$0xff]
    %v833 = vld [vmem:[#allocation10 + $0x80] sm:$0xff]
    %v834 = vld [vmem:[#allocation10 + $0x88] sm:$0xff]
    %v835 = vld [vmem:[#allocation10 + $0x90] sm:$0xff]
    %v836 = vld [vmem:[#allocation10 + $0x98] sm:$0xff]
    %v837 = vld [vmem:[#allocation10 + $0xa0] sm:$0xff]
    %v838 = vld [vmem:[#allocation10 + $0xa8] sm:$0xff]
    %v839 = vld [vmem:[#allocation10 + $0xb0] sm:$0xff]
    %v840 = vld [vmem:[#allocation10 + $0xb8] sm:$0xff]
    %v841 = vld [vmem:[#allocation10 + $0xc0] sm:$0xff]
    %v842 = vld [vmem:[#allocation10 + $0xc8] sm:$0xff]
    %v843 = vld [vmem:[#allocation10 + $0xd0] sm:$0xff]
    %v844 = vld [vmem:[#allocation10 + $0xd8] sm:$0xff]
    %v845 = vld [vmem:[#allocation10 + $0xe0] sm:$0xff]
    %v846 = vld [vmem:[#allocation10 + $0xe8] sm:$0xff]
    %v847 = vld [vmem:[#allocation10 + $0xf0] sm:$0xff]
    %v848 = vld [vmem:[#allocation10 + $0xf8] sm:$0xff]
    %v849 = vld [vmem:[%s2] sm:$0x1]
    %v851 = vlaneseq
    %v852 = vshrl.u32 %v851, 7
    %v853 = vsub.s32 0, %v852
    %v854 = vrot.slane %v849, %v853
    %856 = vmatprep.subr.mxu0 0.0
    %857 = vmatpush1.xpose.msra.mxu0 %v370
    %858 = vmatprep.subr.mxu0 0.0
    %859 = vmatpush1.xpose.msra.mxu0 %v376
    %860 = vmatprep.subr.mxu0 0.0
    %861 = vmatpush1.xpose.msra.mxu0 %v382
    %862 = vmatprep.subr.mxu0 0.0
    %863 = vmatpush1.xpose.msra.mxu0 %v388
    %864 = vmatprep.subr.mxu0 0.0
    %865 = vmatpush1.xpose.msra.mxu0 %v394
    %866 = vmatprep.subr.mxu0 0.0
    %867 = vmatpush1.xpose.msra.mxu0 %v400
    %868 = vmatprep.subr.mxu0 0.0
    %869 = vmatpush1.xpose.msra.mxu0 %v406
    %870 = vmatprep.subr.mxu0 0.0
    %871 = vmatpush1.xpose.msra.mxu0 %v412
    %872 = vmatprep.subr.mxu0 0.0
    %873 = vmatpush1.xpose.msra.mxu0 %v418
    %874 = vmatprep.subr.mxu0 0.0
    %875 = vmatpush1.xpose.msra.mxu0 %v424
    %876 = vmatprep.subr.mxu0 0.0
    %877 = vmatpush1.xpose.msra.mxu0 %v430
    %878 = vmatprep.subr.mxu0 0.0
    %879 = vmatpush1.xpose.msra.mxu0 %v436
    %880 = vmatprep.subr.mxu0 0.0
    %881 = vmatpush1.xpose.msra.mxu0 %v442
    %882 = vmatprep.subr.mxu0 0.0
    %883 = vmatpush1.xpose.msra.mxu0 %v448
    %884 = vmatprep.subr.mxu0 0.0
    %885 = vmatpush1.xpose.msra.mxu0 %v454
    %886 = vmatprep.subr.mxu0 0.0
    %887 = vmatpush1.xpose.msra.mxu0 %v460
    %888 = vmatprep.subr.mxu0 0.0
    %889 = vmatpush1.xpose.msra.mxu0 0.0
    %890 = vmatprep.subr.mxu0 0.0
    %891 = vmatpush1.xpose.msra.mxu0 0.0
    %892 = vmatprep.subr.mxu0 0.0
    %893 = vmatpush1.xpose.msra.mxu0 0.0
    %894 = vmatprep.subr.mxu0 0.0
    %895 = vmatpush1.xpose.msra.mxu0 0.0
    %896 = vmatprep.subr.mxu0 0.0
    %897 = vmatpush1.xpose.msra.mxu0 0.0
    %898 = vmatprep.subr.mxu0 0.0
    %899 = vmatpush1.xpose.msra.mxu0 0.0
    %900 = vmatprep.subr.mxu0 0.0
    %901 = vmatpush1.xpose.msra.mxu0 0.0
    %902 = vmatprep.subr.mxu0 0.0
    %903 = vmatpush1.xpose.msra.mxu0 0.0
    %904 = vmatprep.subr.mxu0 0.0
    %905 = vmatpush1.xpose.msra.mxu0 0.0
    %906 = vmatprep.subr.mxu0 0.0
    %907 = vmatpush1.xpose.msra.mxu0 0.0
    %908 = vmatprep.subr.mxu0 0.0
    %909 = vmatpush1.xpose.msra.mxu0 0.0
    %910 = vmatprep.subr.mxu0 0.0
    %911 = vmatpush1.xpose.msra.mxu0 0.0
    %912 = vmatprep.subr.mxu0 0.0
    %913 = vmatpush1.xpose.msra.mxu0 0.0
    %914 = vmatprep.subr.mxu0 0.0
    %915 = vmatpush1.xpose.msra.mxu0 0.0
    %916 = vmatprep.subr.mxu0 0.0
    %917 = vmatpush1.xpose.msra.mxu0 0.0
    %918 = vmatprep.subr.mxu0 0.0
    %919 = vmatpush1.xpose.msra.mxu0 0.0
    %920 = vmatprep.mubr.f32.mxu0 0.0
    %921 = vmatmul.mubr.f32.gmra.mrb[0].mxu0 %v235
    %v922 = vpop.f32.mrb[0].mxu0
    %v923 = vadd.f32 %v854, %v922
    %v924 = vpop.f32.mrb[0].mxu0
    %925 = vdwg.mxu0
    %926 = vmax.xlane.f32.xlu0 %v923
    %v927 = vpop.xlane.xlu0 %926
    %v928 = vsub.f32 %v923, %v927
    %v929 = vmul.f32 %v928, 1.442695
    %v930 = vpow.pop %v929
    %931 = vadd.xlane.f32.xlu0 %v930
    %v932 = vpop.xlane.xlu0 %931
    %v933 = vrcp.pop %v932
    %v934 = vmul.f32 %v930, %v933
    %935 = vmatprep.subr.mxu0 0.0
    %936 = vmatpush1.msra.mxu0 %v627
    %937 = vmatprep.subr.mxu0 0.0
    %938 = vmatpush1.msra.mxu0 %v633
    %939 = vmatprep.subr.mxu0 0.0
    %940 = vmatpush1.msra.mxu0 %v639
    %941 = vmatprep.subr.mxu0 0.0
    %942 = vmatpush1.msra.mxu0 %v645
    %943 = vmatprep.subr.mxu0 0.0
    %944 = vmatpush1.msra.mxu0 %v651
    %945 = vmatprep.subr.mxu0 0.0
    %946 = vmatpush1.msra.mxu0 %v657
    %947 = vmatprep.subr.mxu0 0.0
    %948 = vmatpush1.msra.mxu0 %v663
    %949 = vmatprep.subr.mxu0 0.0
    %950 = vmatpush1.msra.mxu0 %v669
    %951 = vmatprep.subr.mxu0 0.0
    %952 = vmatpush1.msra.mxu0 %v675
    %953 = vmatprep.subr.mxu0 0.0
    %954 = vmatpush1.msra.mxu0 %v681
    %955 = vmatprep.subr.mxu0 0.0
    %956 = vmatpush1.msra.mxu0 %v687
    %957 = vmatprep.subr.mxu0 0.0
    %958 = vmatpush1.msra.mxu0 %v693
    %959 = vmatprep.subr.mxu0 0.0
    %960 = vmatpush1.msra.mxu0 %v699
    %961 = vmatprep.subr.mxu0 0.0
    %962 = vmatpush1.msra.mxu0 %v705
    %963 = vmatprep.subr.mxu0 0.0
    %964 = vmatpush1.msra.mxu0 %v711
    %965 = vmatprep.subr.mxu0 0.0
    %966 = vmatpush1.msra.mxu0 %v717
    %967 = vmatprep.subr.mxu0 0.0
    %968 = vmatpush1.msra.mxu0 0.0
    %969 = vmatprep.subr.mxu0 0.0
    %970 = vmatpush1.msra.mxu0 0.0
    %971 = vmatprep.subr.mxu0 0.0
    %972 = vmatpush1.msra.mxu0 0.0
    %973 = vmatprep.subr.mxu0 0.0
    %974 = vmatpush1.msra.mxu0 0.0
    %975 = vmatprep.subr.mxu0 0.0
    %976 = vmatpush1.msra.mxu0 0.0
    %977 = vmatprep.subr.mxu0 0.0
    %978 = vmatpush1.msra.mxu0 0.0
    %979 = vmatprep.subr.mxu0 0.0
    %980 = vmatpush1.msra.mxu0 0.0
    %981 = vmatprep.subr.mxu0 0.0
    %982 = vmatpush1.msra.mxu0 0.0
    %983 = vmatprep.subr.mxu0 0.0
    %984 = vmatpush1.msra.mxu0 0.0
    %985 = vmatprep.subr.mxu0 0.0
    %986 = vmatpush1.msra.mxu0 0.0
    %987 = vmatprep.subr.mxu0 0.0
    %988 = vmatpush1.msra.mxu0 0.0
    %989 = vmatprep.subr.mxu0 0.0
    %990 = vmatpush1.msra.mxu0 0.0
    %991 = vmatprep.subr.mxu0 0.0
    %992 = vmatpush1.msra.mxu0 0.0
    %993 = vmatprep.subr.mxu0 0.0
    %994 = vmatpush1.msra.mxu0 0.0
    %995 = vmatprep.subr.mxu0 0.0
    %996 = vmatpush1.msra.mxu0 0.0
    %997 = vmatprep.subr.mxu0 0.0
    %998 = vmatpush1.msra.mxu0 0.0
    %999 = vmatprep.mubr.f32.mxu0 0.0
    %1000 = vmatmul.mubr.f32.gmra.mrb[0].mxu0 %v934
    %v1001 = vpop.f32.mrb[0].mxu0
    %v1002 = vadd.f32 0.0, %v1001
    %v1003 = vpop.f32.mrb[0].mxu0
    %1004 = vdwg.mxu0
    %1005 = vmatprep.subr.mxu0 0.0
    %1006 = vmatpush1.xpose.msra.mxu0 %v372
    %1007 = vmatprep.subr.mxu0 0.0
    %1008 = vmatpush1.xpose.msra.mxu0 %v378
    %1009 = vmatprep.subr.mxu0 0.0
    %1010 = vmatpush1.xpose.msra.mxu0 %v384
    %1011 = vmatprep.subr.mxu0 0.0
    %1012 = vmatpush1.xpose.msra.mxu0 %v390
    %1013 = vmatprep.subr.mxu0 0.0
    %1014 = vmatpush1.xpose.msra.mxu0 %v396
    %1015 = vmatprep.subr.mxu0 0.0
    %1016 = vmatpush1.xpose.msra.mxu0 %v402
    %1017 = vmatprep.subr.mxu0 0.0
    %1018 = vmatpush1.xpose.msra.mxu0 %v408
    %1019 = vmatprep.subr.mxu0 0.0
    %1020 = vmatpush1.xpose.msra.mxu0 %v414
    %1021 = vmatprep.subr.mxu0 0.0
    %1022 = vmatpush1.xpose.msra.mxu0 %v420
    %1023 = vmatprep.subr.mxu0 0.0
    %1024 = vmatpush1.xpose.msra.mxu0 %v426
    %1025 = vmatprep.subr.mxu0 0.0
    %1026 = vmatpush1.xpose.msra.mxu0 %v432
    %1027 = vmatprep.subr.mxu0 0.0
    %1028 = vmatpush1.xpose.msra.mxu0 %v438
    %1029 = vmatprep.subr.mxu0 0.0
    %1030 = vmatpush1.xpose.msra.mxu0 %v444
    %1031 = vmatprep.subr.mxu0 0.0
    %1032 = vmatpush1.xpose.msra.mxu0 %v450
    %1033 = vmatprep.subr.mxu0 0.0
    %1034 = vmatpush1.xpose.msra.mxu0 %v456
    %1035 = vmatprep.subr.mxu0 0.0
    %1036 = vmatpush1.xpose.msra.mxu0 %v462
    %1037 = vmatprep.subr.mxu0 0.0
    %1038 = vmatpush1.xpose.msra.mxu0 0.0
    %1039 = vmatprep.subr.mxu0 0.0
    %1040 = vmatpush1.xpose.msra.mxu0 0.0
    %1041 = vmatprep.subr.mxu0 0.0
    %1042 = vmatpush1.xpose.msra.mxu0 0.0
    %1043 = vmatprep.subr.mxu0 0.0
    %1044 = vmatpush1.xpose.msra.mxu0 0.0
    %1045 = vmatprep.subr.mxu0 0.0
    %1046 = vmatpush1.xpose.msra.mxu0 0.0
    %1047 = vmatprep.subr.mxu0 0.0
    %1048 = vmatpush1.xpose.msra.mxu0 0.0
    %1049 = vmatprep.subr.mxu0 0.0
    %1050 = vmatpush1.xpose.msra.mxu0 0.0
    %1051 = vmatprep.subr.mxu0 0.0
    %1052 = vmatpush1.xpose.msra.mxu0 0.0
    %1053 = vmatprep.subr.mxu0 0.0
    %1054 = vmatpush1.xpose.msra.mxu0 0.0
    %1055 = vmatprep.subr.mxu0 0.0
    %1056 = vmatpush1.xpose.msra.mxu0 0.0
    %1057 = vmatprep.subr.mxu0 0.0
    %1058 = vmatpush1.xpose.msra.mxu0 0.0
    %1059 = vmatprep.subr.mxu0 0.0
    %1060 = vmatpush1.xpose.msra.mxu0 0.0
    %1061 = vmatprep.subr.mxu0 0.0
    %1062 = vmatpush1.xpose.msra.mxu0 0.0
    %1063 = vmatprep.subr.mxu0 0.0
    %1064 = vmatpush1.xpose.msra.mxu0 0.0
    %1065 = vmatprep.subr.mxu0 0.0
    %1066 = vmatpush1.xpose.msra.mxu0 0.0
    %1067 = vmatprep.subr.mxu0 0.0
    %1068 = vmatpush1.xpose.msra.mxu0 0.0
    %1069 = vmatprep.mubr.f32.mxu0 0.0
    %1070 = vmatmul.mubr.f32.gmra.mrb[0].mxu0 %v236
    %v1071 = vpop.f32.mrb[0].mxu0
    %v1072 = vadd.f32 %v854, %v1071
    %v1073 = vpop.f32.mrb[0].mxu0
    %1074 = vdwg.mxu0
    %1075 = vmax.xlane.f32.xlu0 %v1072
    %v1076 = vpop.xlane.xlu0 %1075
    %v1077 = vsub.f32 %v1072, %v1076
    %v1078 = vmul.f32 %v1077, 1.442695
    %v1079 = vpow.pop %v1078
    %1080 = vadd.xlane.f32.xlu0 %v1079
    %v1081 = vpop.xlane.xlu0 %1080
    %v1082 = vrcp.pop %v1081
    %v1083 = vmul.f32 %v1079, %v1082
    %1084 = vmatprep.subr.mxu0 0.0
    %1085 = vmatpush1.msra.mxu0 %v629
    %1086 = vmatprep.subr.mxu0 0.0
    %1087 = vmatpush1.msra.mxu0 %v635
    %1088 = vmatprep.subr.mxu0 0.0
    %1089 = vmatpush1.msra.mxu0 %v641
    %1090 = vmatprep.subr.mxu0 0.0
    %1091 = vmatpush1.msra.mxu0 %v647
    %1092 = vmatprep.subr.mxu0 0.0
    %1093 = vmatpush1.msra.mxu0 %v653
    %1094 = vmatprep.subr.mxu0 0.0
    %1095 = vmatpush1.msra.mxu0 %v659
    %1096 = vmatprep.subr.mxu0 0.0
    %1097 = vmatpush1.msra.mxu0 %v665
    %1098 = vmatprep.subr.mxu0 0.0
    %1099 = vmatpush1.msra.mxu0 %v671
    %1100 = vmatprep.subr.mxu0 0.0
    %1101 = vmatpush1.msra.mxu0 %v677
    %1102 = vmatprep.subr.mxu0 0.0
    %1103 = vmatpush1.msra.mxu0 %v683
    %1104 = vmatprep.subr.mxu0 0.0
    %1105 = vmatpush1.msra.mxu0 %v689
    %1106 = vmatprep.subr.mxu0 0.0
    %1107 = vmatpush1.msra.mxu0 %v695
    %1108 = vmatprep.subr.mxu0 0.0
    %1109 = vmatpush1.msra.mxu0 %v701
    %1110 = vmatprep.subr.mxu0 0.0
    %1111 = vmatpush1.msra.mxu0 %v707
    %1112 = vmatprep.subr.mxu0 0.0
    %1113 = vmatpush1.msra.mxu0 %v713
    %1114 = vmatprep.subr.mxu0 0.0
    %1115 = vmatpush1.msra.mxu0 %v719
    %1116 = vmatprep.subr.mxu0 0.0
    %1117 = vmatpush1.msra.mxu0 0.0
    %1118 = vmatprep.subr.mxu0 0.0
    %1119 = vmatpush1.msra.mxu0 0.0
    %1120 = vmatprep.subr.mxu0 0.0
    %1121 = vmatpush1.msra.mxu0 0.0
    %1122 = vmatprep.subr.mxu0 0.0
    %1123 = vmatpush1.msra.mxu0 0.0
    %1124 = vmatprep.subr.mxu0 0.0
    %1125 = vmatpush1.msra.mxu0 0.0
    %1126 = vmatprep.subr.mxu0 0.0
    %1127 = vmatpush1.msra.mxu0 0.0
    %1128 = vmatprep.subr.mxu0 0.0
    %1129 = vmatpush1.msra.mxu0 0.0
    %1130 = vmatprep.subr.mxu0 0.0
    %1131 = vmatpush1.msra.mxu0 0.0
    %1132 = vmatprep.subr.mxu0 0.0
    %1133 = vmatpush1.msra.mxu0 0.0
    %1134 = vmatprep.subr.mxu0 0.0
    %1135 = vmatpush1.msra.mxu0 0.0
    %1136 = vmatprep.subr.mxu0 0.0
    %1137 = vmatpush1.msra.mxu0 0.0
    %1138 = vmatprep.subr.mxu0 0.0
    %1139 = vmatpush1.msra.mxu0 0.0
    %1140 = vmatprep.subr.mxu0 0.0
    %1141 = vmatpush1.msra.mxu0 0.0
    %1142 = vmatprep.subr.mxu0 0.0
    %1143 = vmatpush1.msra.mxu0 0.0
    %1144 = vmatprep.subr.mxu0 0.0
    %1145 = vmatpush1.msra.mxu0 0.0
    %1146 = vmatprep.subr.mxu0 0.0
    %1147 = vmatpush1.msra.mxu0 0.0
    %1148 = vmatprep.mubr.f32.mxu0 0.0
    %1149 = vmatmul.mubr.f32.gmra.mrb[0].mxu0 %v1083
    %v1150 = vpop.f32.mrb[0].mxu0
    %v1151 = vadd.f32 0.0, %v1150
    %v1152 = vpop.f32.mrb[0].mxu0
    %1153 = vdwg.mxu0
    %1154 = vmatprep.subr.mxu0 0.0
    %1155 = vmatpush1.msra.mxu0 %v833
    %1156 = vmatprep.subr.mxu0 0.0
    %1157 = vmatpush1.msra.mxu0 %v834
    %1158 = vmatprep.subr.mxu0 0.0
    %1159 = vmatpush1.msra.mxu0 %v835
    %1160 = vmatprep.subr.mxu0 0.0
    %1161 = vmatpush1.msra.mxu0 %v836
    %1162 = vmatprep.subr.mxu0 0.0
    %1163 = vmatpush1.msra.mxu0 %v837
    %1164 = vmatprep.subr.mxu0 0.0
    %1165 = vmatpush1.msra.mxu0 %v838
    %1166 = vmatprep.subr.mxu0 0.0
    %1167 = vmatpush1.msra.mxu0 %v839
    %1168 = vmatprep.subr.mxu0 0.0
    %1169 = vmatpush1.msra.mxu0 %v840
    %1170 = vmatprep.subr.mxu0 0.0
    %1171 = vmatpush1.msra.mxu0 %v841
    %1172 = vmatprep.subr.mxu0 0.0
    %1173 = vmatpush1.msra.mxu0 %v842
    %1174 = vmatprep.subr.mxu0 0.0
    %1175 = vmatpush1.msra.mxu0 %v843
    %1176 = vmatprep.subr.mxu0 0.0
    %1177 = vmatpush1.msra.mxu0 %v844
    %1178 = vmatprep.subr.mxu0 0.0
    %1179 = vmatpush1.msra.mxu0 %v845
    %1180 = vmatprep.subr.mxu0 0.0
    %1181 = vmatpush1.msra.mxu0 %v846
    %1182 = vmatprep.subr.mxu0 0.0
    %1183 = vmatpush1.msra.mxu0 %v847
    %1184 = vmatprep.subr.mxu0 0.0
    %1185 = vmatpush1.msra.mxu0 %v848
    %1186 = vmatprep.subr.mxu0 0.0
    %1187 = vmatpush1.msra.mxu0 0.0
    %1188 = vmatprep.subr.mxu0 0.0
    %1189 = vmatpush1.msra.mxu0 0.0
    %1190 = vmatprep.subr.mxu0 0.0
    %1191 = vmatpush1.msra.mxu0 0.0
    %1192 = vmatprep.subr.mxu0 0.0
    %1193 = vmatpush1.msra.mxu0 0.0
    %1194 = vmatprep.subr.mxu0 0.0
    %1195 = vmatpush1.msra.mxu0 0.0
    %1196 = vmatprep.subr.mxu0 0.0
    %1197 = vmatpush1.msra.mxu0 0.0
    %1198 = vmatprep.subr.mxu0 0.0
    %1199 = vmatpush1.msra.mxu0 0.0
    %1200 = vmatprep.subr.mxu0 0.0
    %1201 = vmatpush1.msra.mxu0 0.0
    %1202 = vmatprep.subr.mxu0 0.0
    %1203 = vmatpush1.msra.mxu0 0.0
    %1204 = vmatprep.subr.mxu0 0.0
    %1205 = vmatpush1.msra.mxu0 0.0
    %1206 = vmatprep.subr.mxu0 0.0
    %1207 = vmatpush1.msra.mxu0 0.0
    %1208 = vmatprep.subr.mxu0 0.0
    %1209 = vmatpush1.msra.mxu0 0.0
    %1210 = vmatprep.subr.mxu0 0.0
    %1211 = vmatpush1.msra.mxu0 0.0
    %1212 = vmatprep.subr.mxu0 0.0
    %1213 = vmatpush1.msra.mxu0 0.0
    %1214 = vmatprep.subr.mxu0 0.0
    %1215 = vmatpush1.msra.mxu0 0.0
    %1216 = vmatprep.subr.mxu0 0.0
    %1217 = vmatpush1.msra.mxu0 0.0
    %1218 = vmatprep.mubr.f32.mxu0 0.0
    %1219 = vmatmul.mubr.f32.gmra.mrb[0].mxu0 %v1151
    %v1220 = vpop.f32.mrb[0].mxu0
    %v1221 = vadd.f32 0.0, %v1220
    %v1222 = vpop.f32.mrb[0].mxu0
    %1223 = vdwg.mxu0
    %1224 = vmatprep.subr.mxu0 0.0
    %1225 = vmatpush1.msra.mxu0 %v817
    %1226 = vmatprep.subr.mxu0 0.0
    %1227 = vmatpush1.msra.mxu0 %v818
    %1228 = vmatprep.subr.mxu0 0.0
    %1229 = vmatpush1.msra.mxu0 %v819
    %1230 = vmatprep.subr.mxu0 0.0
    %1231 = vmatpush1.msra.mxu0 %v820
    %1232 = vmatprep.subr.mxu0 0.0
    %1233 = vmatpush1.msra.mxu0 %v821
    %1234 = vmatprep.subr.mxu0 0.0
    %1235 = vmatpush1.msra.mxu0 %v822
    %1236 = vmatprep.subr.mxu0 0.0
    %1237 = vmatpush1.msra.mxu0 %v823
    %1238 = vmatprep.subr.mxu0 0.0
    %1239 = vmatpush1.msra.mxu0 %v824
    %1240 = vmatprep.subr.mxu0 0.0
    %1241 = vmatpush1.msra.mxu0 %v825
    %1242 = vmatprep.subr.mxu0 0.0
    %1243 = vmatpush1.msra.mxu0 %v826
    %1244 = vmatprep.subr.mxu0 0.0
    %1245 = vmatpush1.msra.mxu0 %v827
    %1246 = vmatprep.subr.mxu0 0.0
    %1247 = vmatpush1.msra.mxu0 %v828
    %1248 = vmatprep.subr.mxu0 0.0
    %1249 = vmatpush1.msra.mxu0 %v829
    %1250 = vmatprep.subr.mxu0 0.0
    %1251 = vmatpush1.msra.mxu0 %v830
    %1252 = vmatprep.subr.mxu0 0.0
    %1253 = vmatpush1.msra.mxu0 %v831
    %1254 = vmatprep.subr.mxu0 0.0
    %1255 = vmatpush1.msra.mxu0 %v832
    %1256 = vmatprep.subr.mxu0 0.0
    %1257 = vmatpush1.msra.mxu0 0.0
    %1258 = vmatprep.subr.mxu0 0.0
    %1259 = vmatpush1.msra.mxu0 0.0
    %1260 = vmatprep.subr.mxu0 0.0
    %1261 = vmatpush1.msra.mxu0 0.0
    %1262 = vmatprep.subr.mxu0 0.0
    %1263 = vmatpush1.msra.mxu0 0.0
    %1264 = vmatprep.subr.mxu0 0.0
    %1265 = vmatpush1.msra.mxu0 0.0
    %1266 = vmatprep.subr.mxu0 0.0
    %1267 = vmatpush1.msra.mxu0 0.0
    %1268 = vmatprep.subr.mxu0 0.0
    %1269 = vmatpush1.msra.mxu0 0.0
    %1270 = vmatprep.subr.mxu0 0.0
    %1271 = vmatpush1.msra.mxu0 0.0
    %1272 = vmatprep.subr.mxu0 0.0
    %1273 = vmatpush1.msra.mxu0 0.0
    %1274 = vmatprep.subr.mxu0 0.0
    %1275 = vmatpush1.msra.mxu0 0.0
    %1276 = vmatprep.subr.mxu0 0.0
    %1277 = vmatpush1.msra.mxu0 0.0
    %1278 = vmatprep.subr.mxu0 0.0
    %1279 = vmatpush1.msra.mxu0 0.0
    %1280 = vmatprep.subr.mxu0 0.0
    %1281 = vmatpush1.msra.mxu0 0.0
    %1282 = vmatprep.subr.mxu0 0.0
    %1283 = vmatpush1.msra.mxu0 0.0
    %1284 = vmatprep.subr.mxu0 0.0
    %1285 = vmatpush1.msra.mxu0 0.0
    %1286 = vmatprep.subr.mxu0 0.0
    %1287 = vmatpush1.msra.mxu0 0.0
    %1288 = vmatprep.mubr.f32.mxu0 0.0
    %1289 = vmatmul.mubr.f32.gmra.mrb[0].mxu0 %v1002
    %v1290 = vpop.f32.mrb[0].mxu0
    %v1291 = vadd.f32 %v1221, %v1290
    %v1292 = vpop.f32.mrb[0].mxu0
    %1293 = vdwg.mxu0
    %1294 = vst [vmem:[#allocation11] sm:$0xff] %v1291
    %s1295 = scalar_lea.vmem %s2, 1
    %v1296 = vld [vmem:[%s1295] sm:$0x1]
    %v1298 = vlaneseq
    %v1299 = vshrl.u32 %v1298, 7
    %v1300 = vsub.s32 0, %v1299
    %v1301 = vrot.slane %v1296, %v1300
    %1303 = vmatprep.subr.mxu0 0.0
    %1304 = vmatpush1.xpose.msra.mxu0 %v466
    %1305 = vmatprep.subr.mxu0 0.0
    %1306 = vmatpush1.xpose.msra.mxu0 %v472
    %1307 = vmatprep.subr.mxu0 0.0
    %1308 = vmatpush1.xpose.msra.mxu0 %v478
    %1309 = vmatprep.subr.mxu0 0.0
    %1310 = vmatpush1.xpose.msra.mxu0 %v484
    %1311 = vmatprep.subr.mxu0 0.0
    %1312 = vmatpush1.xpose.msra.mxu0 %v490
    %1313 = vmatprep.subr.mxu0 0.0
    %1314 = vmatpush1.xpose.msra.mxu0 %v496
    %1315 = vmatprep.subr.mxu0 0.0
    %1316 = vmatpush1.xpose.msra.mxu0 %v502
    %1317 = vmatprep.subr.mxu0 0.0
    %1318 = vmatpush1.xpose.msra.mxu0 %v508
    %1319 = vmatprep.subr.mxu0 0.0
    %1320 = vmatpush1.xpose.msra.mxu0 %v514
    %1321 = vmatprep.subr.mxu0 0.0
    %1322 = vmatpush1.xpose.msra.mxu0 %v520
    %1323 = vmatprep.subr.mxu0 0.0
    %1324 = vmatpush1.xpose.msra.mxu0 %v526
    %1325 = vmatprep.subr.mxu0 0.0
    %1326 = vmatpush1.xpose.msra.mxu0 %v532
    %1327 = vmatprep.subr.mxu0 0.0
    %1328 = vmatpush1.xpose.msra.mxu0 %v538
    %1329 = vmatprep.subr.mxu0 0.0
    %1330 = vmatpush1.xpose.msra.mxu0 %v544
    %1331 = vmatprep.subr.mxu0 0.0
    %1332 = vmatpush1.xpose.msra.mxu0 %v550
    %1333 = vmatprep.subr.mxu0 0.0
    %1334 = vmatpush1.xpose.msra.mxu0 %v556
    %1335 = vmatprep.subr.mxu0 0.0
    %1336 = vmatpush1.xpose.msra.mxu0 0.0
    %1337 = vmatprep.subr.mxu0 0.0
    %1338 = vmatpush1.xpose.msra.mxu0 0.0
    %1339 = vmatprep.subr.mxu0 0.0
    %1340 = vmatpush1.xpose.msra.mxu0 0.0
    %1341 = vmatprep.subr.mxu0 0.0
    %1342 = vmatpush1.xpose.msra.mxu0 0.0
    %1343 = vmatprep.subr.mxu0 0.0
    %1344 = vmatpush1.xpose.msra.mxu0 0.0
    %1345 = vmatprep.subr.mxu0 0.0
    %1346 = vmatpush1.xpose.msra.mxu0 0.0
    %1347 = vmatprep.subr.mxu0 0.0
    %1348 = vmatpush1.xpose.msra.mxu0 0.0
    %1349 = vmatprep.subr.mxu0 0.0
    %1350 = vmatpush1.xpose.msra.mxu0 0.0
    %1351 = vmatprep.subr.mxu0 0.0
    %1352 = vmatpush1.xpose.msra.mxu0 0.0
    %1353 = vmatprep.subr.mxu0 0.0
    %1354 = vmatpush1.xpose.msra.mxu0 0.0
    %1355 = vmatprep.subr.mxu0 0.0
    %1356 = vmatpush1.xpose.msra.mxu0 0.0
    %1357 = vmatprep.subr.mxu0 0.0
    %1358 = vmatpush1.xpose.msra.mxu0 0.0
    %1359 = vmatprep.subr.mxu0 0.0
    %1360 = vmatpush1.xpose.msra.mxu0 0.0
    %1361 = vmatprep.subr.mxu0 0.0
    %1362 = vmatpush1.xpose.msra.mxu0 0.0
    %1363 = vmatprep.subr.mxu0 0.0
    %1364 = vmatpush1.xpose.msra.mxu0 0.0
    %1365 = vmatprep.subr.mxu0 0.0
    %1366 = vmatpush1.xpose.msra.mxu0 0.0
    %1367 = vmatprep.mubr.f32.mxu0 0.0
    %1368 = vmatmul.mubr.f32.gmra.mrb[0].mxu0 %v237
    %v1369 = vpop.f32.mrb[0].mxu0
    %v1370 = vadd.f32 %v1301, %v1369
    %v1371 = vpop.f32.mrb[0].mxu0
    %1372 = vdwg.mxu0
    %1373 = vmax.xlane.f32.xlu0 %v1370
    %v1374 = vpop.xlane.xlu0 %1373
    %v1375 = vsub.f32 %v1370, %v1374
    %v1376 = vmul.f32 %v1375, 1.442695
    %v1377 = vpow.pop %v1376
    %1378 = vadd.xlane.f32.xlu0 %v1377
    %v1379 = vpop.xlane.xlu0 %1378
    %v1380 = vrcp.pop %v1379
    %v1381 = vmul.f32 %v1377, %v1380
    %1382 = vmatprep.subr.mxu0 0.0
    %1383 = vmatpush1.msra.mxu0 %v723
    %1384 = vmatprep.subr.mxu0 0.0
    %1385 = vmatpush1.msra.mxu0 %v729
    %1386 = vmatprep.subr.mxu0 0.0
    %1387 = vmatpush1.msra.mxu0 %v735
    %1388 = vmatprep.subr.mxu0 0.0
    %1389 = vmatpush1.msra.mxu0 %v741
    %1390 = vmatprep.subr.mxu0 0.0
    %1391 = vmatpush1.msra.mxu0 %v747
    %1392 = vmatprep.subr.mxu0 0.0
    %1393 = vmatpush1.msra.mxu0 %v753
    %1394 = vmatprep.subr.mxu0 0.0
    %1395 = vmatpush1.msra.mxu0 %v759
    %1396 = vmatprep.subr.mxu0 0.0
    %1397 = vmatpush1.msra.mxu0 %v765
    %1398 = vmatprep.subr.mxu0 0.0
    %1399 = vmatpush1.msra.mxu0 %v771
    %1400 = vmatprep.subr.mxu0 0.0
    %1401 = vmatpush1.msra.mxu0 %v777
    %1402 = vmatprep.subr.mxu0 0.0
    %1403 = vmatpush1.msra.mxu0 %v783
    %1404 = vmatprep.subr.mxu0 0.0
    %1405 = vmatpush1.msra.mxu0 %v789
    %1406 = vmatprep.subr.mxu0 0.0
    %1407 = vmatpush1.msra.mxu0 %v795
    %1408 = vmatprep.subr.mxu0 0.0
    %1409 = vmatpush1.msra.mxu0 %v801
    %1410 = vmatprep.subr.mxu0 0.0
    %1411 = vmatpush1.msra.mxu0 %v807
    %1412 = vmatprep.subr.mxu0 0.0
    %1413 = vmatpush1.msra.mxu0 %v813
    %1414 = vmatprep.subr.mxu0 0.0
    %1415 = vmatpush1.msra.mxu0 0.0
    %1416 = vmatprep.subr.mxu0 0.0
    %1417 = vmatpush1.msra.mxu0 0.0
    %1418 = vmatprep.subr.mxu0 0.0
    %1419 = vmatpush1.msra.mxu0 0.0
    %1420 = vmatprep.subr.mxu0 0.0
    %1421 = vmatpush1.msra.mxu0 0.0
    %1422 = vmatprep.subr.mxu0 0.0
    %1423 = vmatpush1.msra.mxu0 0.0
    %1424 = vmatprep.subr.mxu0 0.0
    %1425 = vmatpush1.msra.mxu0 0.0
    %1426 = vmatprep.subr.mxu0 0.0
    %1427 = vmatpush1.msra.mxu0 0.0
    %1428 = vmatprep.subr.mxu0 0.0
    %1429 = vmatpush1.msra.mxu0 0.0
    %1430 = vmatprep.subr.mxu0 0.0
    %1431 = vmatpush1.msra.mxu0 0.0
    %1432 = vmatprep.subr.mxu0 0.0
    %1433 = vmatpush1.msra.mxu0 0.0
    %1434 = vmatprep.subr.mxu0 0.0
    %1435 = vmatpush1.msra.mxu0 0.0
    %1436 = vmatprep.subr.mxu0 0.0
    %1437 = vmatpush1.msra.mxu0 0.0
    %1438 = vmatprep.subr.mxu0 0.0
    %1439 = vmatpush1.msra.mxu0 0.0
    %1440 = vmatprep.subr.mxu0 0.0
    %1441 = vmatpush1.msra.mxu0 0.0
    %1442 = vmatprep.subr.mxu0 0.0
    %1443 = vmatpush1.msra.mxu0 0.0
    %1444 = vmatprep.subr.mxu0 0.0
    %1445 = vmatpush1.msra.mxu0 0.0
    %1446 = vmatprep.mubr.f32.mxu0 0.0
    %1447 = vmatmul.mubr.f32.gmra.mrb[0].mxu0 %v1381
    %v1448 = vpop.f32.mrb[0].mxu0
    %v1449 = vadd.f32 0.0, %v1448
    %v1450 = vpop.f32.mrb[0].mxu0
    %1451 = vdwg.mxu0
    %1452 = vmatprep.subr.mxu0 0.0
    %1453 = vmatpush1.xpose.msra.mxu0 %v468
    %1454 = vmatprep.subr.mxu0 0.0
    %1455 = vmatpush1.xpose.msra.mxu0 %v474
    %1456 = vmatprep.subr.mxu0 0.0
    %1457 = vmatpush1.xpose.msra.mxu0 %v480
    %1458 = vmatprep.subr.mxu0 0.0
    %1459 = vmatpush1.xpose.msra.mxu0 %v486
    %1460 = vmatprep.subr.mxu0 0.0
    %1461 = vmatpush1.xpose.msra.mxu0 %v492
    %1462 = vmatprep.subr.mxu0 0.0
    %1463 = vmatpush1.xpose.msra.mxu0 %v498
    %1464 = vmatprep.subr.mxu0 0.0
    %1465 = vmatpush1.xpose.msra.mxu0 %v504
    %1466 = vmatprep.subr.mxu0 0.0
    %1467 = vmatpush1.xpose.msra.mxu0 %v510
    %1468 = vmatprep.subr.mxu0 0.0
    %1469 = vmatpush1.xpose.msra.mxu0 %v516
    %1470 = vmatprep.subr.mxu0 0.0
    %1471 = vmatpush1.xpose.msra.mxu0 %v522
    %1472 = vmatprep.subr.mxu0 0.0
    %1473 = vmatpush1.xpose.msra.mxu0 %v528
    %1474 = vmatprep.subr.mxu0 0.0
    %1475 = vmatpush1.xpose.msra.mxu0 %v534
    %1476 = vmatprep.subr.mxu0 0.0
    %1477 = vmatpush1.xpose.msra.mxu0 %v540
    %1478 = vmatprep.subr.mxu0 0.0
    %1479 = vmatpush1.xpose.msra.mxu0 %v546
    %1480 = vmatprep.subr.mxu0 0.0
    %1481 = vmatpush1.xpose.msra.mxu0 %v552
    %1482 = vmatprep.subr.mxu0 0.0
    %1483 = vmatpush1.xpose.msra.mxu0 %v558
    %1484 = vmatprep.subr.mxu0 0.0
    %1485 = vmatpush1.xpose.msra.mxu0 0.0
    %1486 = vmatprep.subr.mxu0 0.0
    %1487 = vmatpush1.xpose.msra.mxu0 0.0
    %1488 = vmatprep.subr.mxu0 0.0
    %1489 = vmatpush1.xpose.msra.mxu0 0.0
    %1490 = vmatprep.subr.mxu0 0.0
    %1491 = vmatpush1.xpose.msra.mxu0 0.0
    %1492 = vmatprep.subr.mxu0 0.0
    %1493 = vmatpush1.xpose.msra.mxu0 0.0
    %1494 = vmatprep.subr.mxu0 0.0
    %1495 = vmatpush1.xpose.msra.mxu0 0.0
    %1496 = vmatprep.subr.mxu0 0.0
    %1497 = vmatpush1.xpose.msra.mxu0 0.0
    %1498 = vmatprep.subr.mxu0 0.0
    %1499 = vmatpush1.xpose.msra.mxu0 0.0
    %1500 = vmatprep.subr.mxu0 0.0
    %1501 = vmatpush1.xpose.msra.mxu0 0.0
    %1502 = vmatprep.subr.mxu0 0.0
    %1503 = vmatpush1.xpose.msra.mxu0 0.0
    %1504 = vmatprep.subr.mxu0 0.0
    %1505 = vmatpush1.xpose.msra.mxu0 0.0
    %1506 = vmatprep.subr.mxu0 0.0
    %1507 = vmatpush1.xpose.msra.mxu0 0.0
    %1508 = vmatprep.subr.mxu0 0.0
    %1509 = vmatpush1.xpose.msra.mxu0 0.0
    %1510 = vmatprep.subr.mxu0 0.0
    %1511 = vmatpush1.xpose.msra.mxu0 0.0
    %1512 = vmatprep.subr.mxu0 0.0
    %1513 = vmatpush1.xpose.msra.mxu0 0.0
    %1514 = vmatprep.subr.mxu0 0.0
    %1515 = vmatpush1.xpose.msra.mxu0 0.0
    %1516 = vmatprep.mubr.f32.mxu0 0.0
    %1517 = vmatmul.mubr.f32.gmra.mrb[0].mxu0 %v238
    %v1518 = vpop.f32.mrb[0].mxu0
    %v1519 = vadd.f32 %v1301, %v1518
    %v1520 = vpop.f32.mrb[0].mxu0
    %1521 = vdwg.mxu0
    %1522 = vmax.xlane.f32.xlu0 %v1519
    %v1523 = vpop.xlane.xlu0 %1522
    %v1524 = vsub.f32 %v1519, %v1523
    %v1525 = vmul.f32 %v1524, 1.442695
    %v1526 = vpow.pop %v1525
    %1527 = vadd.xlane.f32.xlu0 %v1526
    %v1528 = vpop.xlane.xlu0 %1527
    %v1529 = vrcp.pop %v1528
    %v1530 = vmul.f32 %v1526, %v1529
    %1531 = vmatprep.subr.mxu0 0.0
    %1532 = vmatpush1.msra.mxu0 %v725
    %1533 = vmatprep.subr.mxu0 0.0
    %1534 = vmatpush1.msra.mxu0 %v731
    %1535 = vmatprep.subr.mxu0 0.0
    %1536 = vmatpush1.msra.mxu0 %v737
    %1537 = vmatprep.subr.mxu0 0.0
    %1538 = vmatpush1.msra.mxu0 %v743
    %1539 = vmatprep.subr.mxu0 0.0
    %1540 = vmatpush1.msra.mxu0 %v749
    %1541 = vmatprep.subr.mxu0 0.0
    %1542 = vmatpush1.msra.mxu0 %v755
    %1543 = vmatprep.subr.mxu0 0.0
    %1544 = vmatpush1.msra.mxu0 %v761
    %1545 = vmatprep.subr.mxu0 0.0
    %1546 = vmatpush1.msra.mxu0 %v767
    %1547 = vmatprep.subr.mxu0 0.0
    %1548 = vmatpush1.msra.mxu0 %v773
    %1549 = vmatprep.subr.mxu0 0.0
    %1550 = vmatpush1.msra.mxu0 %v779
    %1551 = vmatprep.subr.mxu0 0.0
    %1552 = vmatpush1.msra.mxu0 %v785
    %1553 = vmatprep.subr.mxu0 0.0
    %1554 = vmatpush1.msra.mxu0 %v791
    %1555 = vmatprep.subr.mxu0 0.0
    %1556 = vmatpush1.msra.mxu0 %v797
    %1557 = vmatprep.subr.mxu0 0.0
    %1558 = vmatpush1.msra.mxu0 %v803
    %1559 = vmatprep.subr.mxu0 0.0
    %1560 = vmatpush1.msra.mxu0 %v809
    %1561 = vmatprep.subr.mxu0 0.0
    %1562 = vmatpush1.msra.mxu0 %v815
    %1563 = vmatprep.subr.mxu0 0.0
    %1564 = vmatpush1.msra.mxu0 0.0
    %1565 = vmatprep.subr.mxu0 0.0
    %1566 = vmatpush1.msra.mxu0 0.0
    %1567 = vmatprep.subr.mxu0 0.0
    %1568 = vmatpush1.msra.mxu0 0.0
    %1569 = vmatprep.subr.mxu0 0.0
    %1570 = vmatpush1.msra.mxu0 0.0
    %1571 = vmatprep.subr.mxu0 0.0
    %1572 = vmatpush1.msra.mxu0 0.0
    %1573 = vmatprep.subr.mxu0 0.0
    %1574 = vmatpush1.msra.mxu0 0.0
    %1575 = vmatprep.subr.mxu0 0.0
    %1576 = vmatpush1.msra.mxu0 0.0
    %1577 = vmatprep.subr.mxu0 0.0
    %1578 = vmatpush1.msra.mxu0 0.0
    %1579 = vmatprep.subr.mxu0 0.0
    %1580 = vmatpush1.msra.mxu0 0.0
    %1581 = vmatprep.subr.mxu0 0.0
    %1582 = vmatpush1.msra.mxu0 0.0
    %1583 = vmatprep.subr.mxu0 0.0
    %1584 = vmatpush1.msra.mxu0 0.0
    %1585 = vmatprep.subr.mxu0 0.0
    %1586 = vmatpush1.msra.mxu0 0.0
    %1587 = vmatprep.subr.mxu0 0.0
    %1588 = vmatpush1.msra.mxu0 0.0
    %1589 = vmatprep.subr.mxu0 0.0
    %1590 = vmatpush1.msra.mxu0 0.0
    %1591 = vmatprep.subr.mxu0 0.0
    %1592 = vmatpush1.msra.mxu0 0.0
    %1593 = vmatprep.subr.mxu0 0.0
    %1594 = vmatpush1.msra.mxu0 0.0
    %1595 = vmatprep.mubr.f32.mxu0 0.0
    %1596 = vmatmul.mubr.f32.gmra.mrb[0].mxu0 %v1530
    %v1597 = vpop.f32.mrb[0].mxu0
    %v1598 = vadd.f32 0.0, %v1597
    %v1599 = vpop.f32.mrb[0].mxu0
    %1600 = vdwg.mxu0
    %1601 = vmatprep.subr.mxu0 0.0
    %1602 = vmatpush1.msra.mxu0 %v833
    %1603 = vmatprep.subr.mxu0 0.0
    %1604 = vmatpush1.msra.mxu0 %v834
    %1605 = vmatprep.subr.mxu0 0.0
    %1606 = vmatpush1.msra.mxu0 %v835
    %1607 = vmatprep.subr.mxu0 0.0
    %1608 = vmatpush1.msra.mxu0 %v836
    %1609 = vmatprep.subr.mxu0 0.0
    %1610 = vmatpush1.msra.mxu0 %v837
    %1611 = vmatprep.subr.mxu0 0.0
    %1612 = vmatpush1.msra.mxu0 %v838
    %1613 = vmatprep.subr.mxu0 0.0
    %1614 = vmatpush1.msra.mxu0 %v839
    %1615 = vmatprep.subr.mxu0 0.0
    %1616 = vmatpush1.msra.mxu0 %v840
    %1617 = vmatprep.subr.mxu0 0.0
    %1618 = vmatpush1.msra.mxu0 %v841
    %1619 = vmatprep.subr.mxu0 0.0
    %1620 = vmatpush1.msra.mxu0 %v842
    %1621 = vmatprep.subr.mxu0 0.0
    %1622 = vmatpush1.msra.mxu0 %v843
    %1623 = vmatprep.subr.mxu0 0.0
    %1624 = vmatpush1.msra.mxu0 %v844
    %1625 = vmatprep.subr.mxu0 0.0
    %1626 = vmatpush1.msra.mxu0 %v845
    %1627 = vmatprep.subr.mxu0 0.0
    %1628 = vmatpush1.msra.mxu0 %v846
    %1629 = vmatprep.subr.mxu0 0.0
    %1630 = vmatpush1.msra.mxu0 %v847
    %1631 = vmatprep.subr.mxu0 0.0
    %1632 = vmatpush1.msra.mxu0 %v848
    %1633 = vmatprep.subr.mxu0 0.0
    %1634 = vmatpush1.msra.mxu0 0.0
    %1635 = vmatprep.subr.mxu0 0.0
    %1636 = vmatpush1.msra.mxu0 0.0
    %1637 = vmatprep.subr.mxu0 0.0
    %1638 = vmatpush1.msra.mxu0 0.0
    %1639 = vmatprep.subr.mxu0 0.0
    %1640 = vmatpush1.msra.mxu0 0.0
    %1641 = vmatprep.subr.mxu0 0.0
    %1642 = vmatpush1.msra.mxu0 0.0
    %1643 = vmatprep.subr.mxu0 0.0
    %1644 = vmatpush1.msra.mxu0 0.0
    %1645 = vmatprep.subr.mxu0 0.0
    %1646 = vmatpush1.msra.mxu0 0.0
    %1647 = vmatprep.subr.mxu0 0.0
    %1648 = vmatpush1.msra.mxu0 0.0
    %1649 = vmatprep.subr.mxu0 0.0
    %1650 = vmatpush1.msra.mxu0 0.0
    %1651 = vmatprep.subr.mxu0 0.0
    %1652 = vmatpush1.msra.mxu0 0.0
    %1653 = vmatprep.subr.mxu0 0.0
    %1654 = vmatpush1.msra.mxu0 0.0
    %1655 = vmatprep.subr.mxu0 0.0
    %1656 = vmatpush1.msra.mxu0 0.0
    %1657 = vmatprep.subr.mxu0 0.0
    %1658 = vmatpush1.msra.mxu0 0.0
    %1659 = vmatprep.subr.mxu0 0.0
    %1660 = vmatpush1.msra.mxu0 0.0
    %1661 = vmatprep.subr.mxu0 0.0
    %1662 = vmatpush1.msra.mxu0 0.0
    %1663 = vmatprep.subr.mxu0 0.0
    %1664 = vmatpush1.msra.mxu0 0.0
    %1665 = vmatprep.mubr.f32.mxu0 0.0
    %1666 = vmatmul.mubr.f32.gmra.mrb[0].mxu0 %v1598
    %v1667 = vpop.f32.mrb[0].mxu0
    %v1668 = vadd.f32 0.0, %v1667
    %v1669 = vpop.f32.mrb[0].mxu0
    %1670 = vdwg.mxu0
    %1671 = vmatprep.subr.mxu0 0.0
    %1672 = vmatpush1.msra.mxu0 %v817
    %1673 = vmatprep.subr.mxu0 0.0
    %1674 = vmatpush1.msra.mxu0 %v818
    %1675 = vmatprep.subr.mxu0 0.0
    %1676 = vmatpush1.msra.mxu0 %v819
    %1677 = vmatprep.subr.mxu0 0.0
    %1678 = vmatpush1.msra.mxu0 %v820
    %1679 = vmatprep.subr.mxu0 0.0
    %1680 = vmatpush1.msra.mxu0 %v821
    %1681 = vmatprep.subr.mxu0 0.0
    %1682 = vmatpush1.msra.mxu0 %v822
    %1683 = vmatprep.subr.mxu0 0.0
    %1684 = vmatpush1.msra.mxu0 %v823
    %1685 = vmatprep.subr.mxu0 0.0
    %1686 = vmatpush1.msra.mxu0 %v824
    %1687 = vmatprep.subr.mxu0 0.0
    %1688 = vmatpush1.msra.mxu0 %v825
    %1689 = vmatprep.subr.mxu0 0.0
    %1690 = vmatpush1.msra.mxu0 %v826
    %1691 = vmatprep.subr.mxu0 0.0
    %1692 = vmatpush1.msra.mxu0 %v827
    %1693 = vmatprep.subr.mxu0 0.0
    %1694 = vmatpush1.msra.mxu0 %v828
    %1695 = vmatprep.subr.mxu0 0.0
    %1696 = vmatpush1.msra.mxu0 %v829
    %1697 = vmatprep.subr.mxu0 0.0
    %1698 = vmatpush1.msra.mxu0 %v830
    %1699 = vmatprep.subr.mxu0 0.0
    %1700 = vmatpush1.msra.mxu0 %v831
    %1701 = vmatprep.subr.mxu0 0.0
    %1702 = vmatpush1.msra.mxu0 %v832
    %1703 = vmatprep.subr.mxu0 0.0
    %1704 = vmatpush1.msra.mxu0 0.0
    %1705 = vmatprep.subr.mxu0 0.0
    %1706 = vmatpush1.msra.mxu0 0.0
    %1707 = vmatprep.subr.mxu0 0.0
    %1708 = vmatpush1.msra.mxu0 0.0
    %1709 = vmatprep.subr.mxu0 0.0
    %1710 = vmatpush1.msra.mxu0 0.0
    %1711 = vmatprep.subr.mxu0 0.0
    %1712 = vmatpush1.msra.mxu0 0.0
    %1713 = vmatprep.subr.mxu0 0.0
    %1714 = vmatpush1.msra.mxu0 0.0
    %1715 = vmatprep.subr.mxu0 0.0
    %1716 = vmatpush1.msra.mxu0 0.0
    %1717 = vmatprep.subr.mxu0 0.0
    %1718 = vmatpush1.msra.mxu0 0.0
    %1719 = vmatprep.subr.mxu0 0.0
    %1720 = vmatpush1.msra.mxu0 0.0
    %1721 = vmatprep.subr.mxu0 0.0
    %1722 = vmatpush1.msra.mxu0 0.0
    %1723 = vmatprep.subr.mxu0 0.0
    %1724 = vmatpush1.msra.mxu0 0.0
    %1725 = vmatprep.subr.mxu0 0.0
    %1726 = vmatpush1.msra.mxu0 0.0
    %1727 = vmatprep.subr.mxu0 0.0
    %1728 = vmatpush1.msra.mxu0 0.0
    %1729 = vmatprep.subr.mxu0 0.0
    %1730 = vmatpush1.msra.mxu0 0.0
    %1731 = vmatprep.subr.mxu0 0.0
    %1732 = vmatpush1.msra.mxu0 0.0
    %1733 = vmatprep.subr.mxu0 0.0
    %1734 = vmatpush1.msra.mxu0 0.0
    %1735 = vmatprep.mubr.f32.mxu0 0.0
    %1736 = vmatmul.mubr.f32.gmra.mrb[0].mxu0 %v1449
    %v1737 = vpop.f32.mrb[0].mxu0
    %v1738 = vadd.f32 %v1668, %v1737
    %v1739 = vpop.f32.mrb[0].mxu0
    %1740 = vdwg.mxu0
    %s1741 = scalar_lea.vmem [#allocation11], 8
    %1742 = vst [vmem:[%s1741] sm:$0xff] %v1738
    // Predicated region
    $region46: #{tpu_custom_call.1} parent=1 // pred_check
      _
    $region47: #{tpu_custom_call.1} parent=1 // pred_check_branch
      %1744 = sbr.rel (0) target = $region49
    $region48: #{tpu_custom_call.1} parent=1 // pred_region
      %s1746 = ssub.s32 256, 256
      %1747 = vsyncadd [#allocation4], %s1746
      %s1748 = sshll.u32 [#allocation11], 4
      %s1749 = int_to_ptr.vmem [resolvable:$true] %s1748
      %1754 = dma.vmem_to_hbm [thread:$0]  %s1749, 256, %s6, [#allocation4], 128, 128, 8
    $region49: #{tpu_custom_call.1} parent=1 // pred_fallthru
      _
    // Predicated region
    $region50: #{tpu_custom_call.1} parent=1 // pred_check
      _
    $region51: #{tpu_custom_call.1} parent=1 // pred_check_branch
      %1756 = sbr.rel (0) target = $region53
    $region52: #{tpu_custom_call.1} parent=1 // pred_region
      %1757 = dma.done [#allocation4], 256
    $region53: #{tpu_custom_call.1} parent=1 // pred_fallthru
      _
    %1758 = vsyncpa [#allocation3], 1
    %1759 = vsyncpa [#allocation6], 1
    %1760 = vsyncpa [#allocation9], 1
    %1761 = vsyncpa [#allocation4], 1

</llo_original>
